<compile_context>
chip_gen: v7x
topology: tpu7x:2x2x1
jax: 0.10.0
libtpu: 0.0.40
codegen_flags: <defaults>
</compile_context>

<pallas_src>
import functools

import jax
import jax.numpy as jnp
from jax.experimental import pallas as pl
from jax.experimental.pallas import tpu as pltpu


def _round_up(x, m):
    return ((x + m - 1) // m) * m


def _round_down(x, m):
    return (x // m) * m


def _vmem_budgets():
    """(single-buffer per-step block budget, vmem_limit_bytes) from physical VMEM."""
    try:
        capacity = int(pltpu.get_tpu_info().vmem_capacity_bytes)
    except Exception:  # non-TPU trace / older jax: assume the smallest (v7x, 64 MiB)
        capacity = 64 * 1024 * 1024
    vmem_limit = (capacity * 3) // 4   # 48 MiB on v7x, 96 MiB on v5e/v6e
    step_budget = capacity // 6        # ~10.7 MiB on v7x, ~21 MiB on v5e/v6e
    return step_budget, vmem_limit


# ----------------------------------------------------------------------------
# Kernels
# ----------------------------------------------------------------------------
def _featurizer_nchw_kernel(fac_h_ref, fac_w_ref, img_ref, o_ref):
    # fac_h_ref: (4F, TH, 1)  fac_w_ref: (4F, 1, TW)  img_ref: (C, TH, TW)
    # o_ref: (4F + C, TH, TW)
    four_f = fac_h_ref.shape[0]
    # Complementary-zero factor tables: even channels carry the row term, odd
    # channels the column term, already in sin-then-cos channel order, so one
    # broadcast add reproduces all Fourier channels with no transcendentals.
    o_ref[0:four_f] = (fac_h_ref[...] + fac_w_ref[...]).astype(o_ref.dtype)
    o_ref[four_f:] = img_ref[...].astype(o_ref.dtype)


def _featurizer_flat_kernel(phase_ref, img_ref, o_ref):
    # phase_ref: (2F, TL)  img_ref: (C, TL)  o_ref: (4F + C, TL)
    two_f = phase_ref.shape[0]
    ph = phase_ref[...]
    o_ref[0:two_f] = jnp.sin(ph).astype(o_ref.dtype)
    o_ref[two_f:2 * two_f] = jnp.cos(ph).astype(o_ref.dtype)
    o_ref[2 * two_f:] = img_ref[...].astype(o_ref.dtype)


# ----------------------------------------------------------------------------
# Tile sizing (VMEM-aware, generation-aware)
# ----------------------------------------------------------------------------
def _pick_nchw_tiles(h, w, c_in, c_out, img_isz, out_isz, f4, granule,
                     step_budget, vmem_limit):
    headroom = int(vmem_limit * 0.9)
    per_pix_io = c_in * img_isz + c_out * out_isz   # image-in + out, per pixel

    def max_rows(tw):
        twp = _round_up(min(tw, w), 128)
        a = twp * per_pix_io + f4 * 128 * 4         # per row: img+out + fac_h (lane-padded)
        t = f4 * twp * 4                            # per row: f32 broadcast temporary
        fixed = f4 * 8 * twp * 4                    # fac_w block (sublane-padded)
        r1 = (step_budget - fixed) // a             # single-buffer budget
        r2 = (headroom - 2 * fixed) // (2 * a + t)  # double-buffered + temps
        return min(r1, r2)

    rows = max_rows(w)
    if rows >= min(h, granule):
        th = h if rows >= h else _round_down(rows, granule)
        return th, w

    # Even a minimal row block is too big at full width -> tile W as well.
    th = h if h <= granule else granule
    thp = _round_up(th, granule)
    d = thp * per_pix_io + f4 * 8 * 4               # per 1-lane column io
    e = f4 * thp * 4                                # per 1-lane column temporary
    fixed = f4 * thp * 128 * 4                      # fac_h block (lane-padded)
    c1 = (step_budget - fixed) // d
    c2 = (headroom - 2 * fixed) // (2 * d + e)
    tw = max(128, _round_down(min(c1, c2), 128))
    return th, min(tw, w)


def _pick_flat_tile(n_lanes, c_in, c_out, img_isz, out_isz, f2,
                    step_budget, vmem_limit):
    headroom = int(vmem_limit * 0.9)
    sub_img = max(8, 32 // img_isz)
    a = (_round_up(f2, 8) * 4                       # phase block
         + _round_up(c_in, sub_img) * img_isz       # image block
         + _round_up(c_out, 8) * out_isz)           # output block
    t = 2 * f2 * 4                                  # sin + cos f32 temporaries
    lanes = min(step_budget // a, headroom // (2 * a + t))
    tl = max(128, _round_down(lanes, 128))
    return n_lanes if tl >= n_lanes else tl


# ----------------------------------------------------------------------------
# Wrapper
# ----------------------------------------------------------------------------
@functools.partial(jax.jit, static_argnames=("n_freqs",))
def simple_implicit_featurizer(original_image, n_freqs=20):
    b, c, h, w = original_image.shape
    f2 = 2 * n_freqs
    f4 = 4 * n_freqs
    c_out = f4 + c
    # torch.cat type-promotes: f32 sin/cos features promote bf16/f16 images.
    out_dtype = jnp.promote_types(jnp.float32, original_image.dtype)
    img_isz = original_image.dtype.itemsize
    out_isz = jnp.dtype(out_dtype).itemsize

    step_budget, vmem_limit = _vmem_budgets()

    grid_h = jnp.linspace(-1.0, 1.0, h, dtype=jnp.float32)
    grid_w = jnp.linspace(-1.0, 1.0, w, dtype=jnp.float32)
    freqs = jnp.exp(jnp.linspace(-2.0, 10.0, n_freqs, dtype=jnp.float32))
    ph_h = freqs[:, None] * grid_h[None, :]          # (F, h)
    ph_w = freqs[:, None] * grid_w[None, :]          # (F, w)

    if w >= 128:
        # ---- Lane-dense NCHW path: broadcast-add of 1-D factor tables -------
        fac_h = jnp.zeros((f4, h), jnp.float32)
        fac_h = fac_h.at[0:f2:2].set(jnp.sin(ph_h)).at[f2::2].set(jnp.cos(ph_h))
        fac_w = jnp.zeros((f4, w), jnp.float32)
        fac_w = fac_w.at[1:f2:2].set(jnp.sin(ph_w)).at[f2 + 1::2].set(jnp.cos(ph_w))
        fac_h = fac_h[:, :, None]                    # (4F, h, 1): rows -> sublanes
        fac_w = fac_w[:, None, :]                    # (4F, 1, w): cols -> lanes

        granule = max(8, 32 // min(img_isz, out_isz))
        th, tw = _pick_nchw_tiles(h, w, c, c_out, img_isz, out_isz, f4, granule,
                                  step_budget, vmem_limit)
        grid = (pl.cdiv(h, th), pl.cdiv(w, tw), b)

        return pl.pallas_call(
            _featurizer_nchw_kernel,
            out_shape=jax.ShapeDtypeStruct((b, c_out, h, w), out_dtype),
            grid=grid,
            in_specs=[
                pl.BlockSpec((f4, th, 1), lambda hi, wi, bi: (0, hi, 0)),
                pl.BlockSpec((f4, 1, tw), lambda hi, wi, bi: (0, 0, wi)),
                pl.BlockSpec((pl.Squeezed(), c, th, tw),
                             lambda hi, wi, bi: (bi, 0, hi, wi)),
            ],
            out_specs=pl.BlockSpec((pl.Squeezed(), c_out, th, tw),
                                   lambda hi, wi, bi: (bi, 0, hi, wi)),
            compiler_params=pltpu.CompilerParams(
                # No cross-step state -> every axis is megacore-shardable.
                dimension_semantics=("parallel", "parallel", "parallel"),
                vmem_limit_bytes=vmem_limit,
            ),
            cost_estimate=pl.CostEstimate(
                flops=b * f4 * h * w,
                transcendentals=2 * n_freqs * (h + w),
                bytes_accessed=(original_image.size * img_isz
                                + b * c_out * h * w * out_isz),
            ),
        )(fac_h, fac_w, original_image)

    # ---- Lane-dense flattened path for small feature maps (w < 128) ---------
    length = h * w
    phase = jnp.zeros((f2, h, w), jnp.float32)
    phase = phase.at[0::2].set(freqs[:, None, None] * grid_h[None, :, None])
    phase = phase.at[1::2].set(freqs[:, None, None] * grid_w[None, None, :])
    phase = phase.reshape(f2, length)                # interleaved phase, flat spatial
    img_flat = original_image.reshape(b, c, length)  # free: row-major contiguous

    tl = _pick_flat_tile(length, c, c_out, img_isz, out_isz, f2,
                         step_budget, vmem_limit)
    grid = (pl.cdiv(length, tl), b)

    out = pl.pallas_call(
        _featurizer_flat_kernel,
        out_shape=jax.ShapeDtypeStruct((b, c_out, length), out_dtype),
        grid=grid,
        in_specs=[
            pl.BlockSpec((f2, tl), lambda li, bi: (0, li)),
            pl.BlockSpec((pl.Squeezed(), c, tl), lambda li, bi: (bi, 0, li)),
        ],
        out_specs=pl.BlockSpec((pl.Squeezed(), c_out, tl),
                               lambda li, bi: (bi, 0, li)),
        compiler_params=pltpu.CompilerParams(
            dimension_semantics=("parallel", "parallel"),
            vmem_limit_bytes=vmem_limit,
        ),
        cost_estimate=pl.CostEstimate(
            flops=b * f2 * h * w,
            transcendentals=b * f4 * h * w,
            bytes_accessed=(original_image.size * img_isz + f2 * length * 4
                            + b * c_out * length * out_isz),
        ),
    )(phase, img_flat)
    return out.reshape(b, c_out, h, w)


# ----------------------------------------------------------------------------
# Pure-JAX reference (port of SimpleImplicitFeaturizer.forward) for checking
# ----------------------------------------------------------------------------
def _reference(original_image, n_freqs=20):
    b, c, h, w = original_image.shape
    gh = jnp.linspace(-1.0, 1.0, h, dtype=jnp.float32)
    gw = jnp.linspace(-1.0, 1.0, w, dtype=jnp.float32)
    mesh_h = jnp.broadcast_to(gh[:, None], (h, w))
    mesh_w = jnp.broadcast_to(gw[None, :], (h, w))
    feats = jnp.broadcast_to(jnp.stack([mesh_h, mesh_w])[None], (b, 2, h, w))[:, None]
    freqs = jnp.exp(jnp.linspace(-2.0, 10.0, n_freqs, dtype=jnp.float32))
    feats = (feats * freqs.reshape(1, n_freqs, 1, 1, 1)).reshape(b, 2 * n_freqs, h, w)
    out_dtype = jnp.promote_types(jnp.float32, original_image.dtype)
    return jnp.concatenate(
        [jnp.sin(feats), jnp.cos(feats), original_image.astype(out_dtype)], axis=1
    ).astype(out_dtype)


if __name__ == "__main__":
    n_freqs = 20

    # Small-spatial case (W < 128): exercises the lane-dense flattened path.
    img = jax.random.normal(jax.random.PRNGKey(0), (2, 3, 16, 16), dtype=jnp.float32)
    out = jax.block_until_ready(simple_implicit_featurizer(img, n_freqs=n_freqs))
    assert out.shape == (2, 4 * n_freqs + 3, 16, 16), out.shape
    assert out.dtype == jnp.float32
    assert bool(jnp.array_equal(out[:, 4 * n_freqs:], img))   # exact image passthrough
    ref = _reference(img, n_freqs=n_freqs)
    err = float(jnp.max(jnp.abs(out - ref)))
    # Phases reach exp(10) ~ 2.2e4 rad; allow f32 range-reduction differences.
    assert err < 5e-2, f"flat path max abs error vs reference: {err}"

    # Lane-dense case (W >= 128): exercises the NCHW broadcast-add path.
    img2 = jax.random.normal(jax.random.PRNGKey(0), (1, 3, 8, 128), dtype=jnp.float32)
    out2 = jax.block_until_ready(simple_implicit_featurizer(img2, n_freqs=n_freqs))
    assert out2.shape == (1, 4 * n_freqs + 3, 8, 128), out2.shape
    assert bool(jnp.array_equal(out2[:, 4 * n_freqs:], img2))
    ref2 = _reference(img2, n_freqs=n_freqs)
    err2 = float(jnp.max(jnp.abs(out2 - ref2)))
    assert err2 < 5e-2, f"nchw path max abs error vs reference: {err2}"

    print("KERNEL_OK")
</pallas_src>

<mosaic_0001>
module attributes {stable_mosaic.version = 11 : i64} {
  func.func @_featurizer_flat_kernel(%arg0: i32, %arg1: i32, %arg2: memref<40x256xf32, #tpu.memory_space<vmem>>, %arg3: memref<1x3x256xf32, #tpu.memory_space<vmem>>, %arg4: memref<1x83x256xf32, #tpu.memory_space<vmem>>) attributes {dimension_semantics = [#tpu.dimension_semantics<parallel>, #tpu.dimension_semantics<parallel>], iteration_bounds = array<i64: 1, 2>, scalar_prefetch = 0 : i64, scratch_operands = 0 : i64, tpu.core_type = #tpu.core_type<tc>, window_params = [{transform_indices = @transform_0, window_bounds = array<i64: 40, 256>}, {transform_indices = @transform_1, window_bounds = array<i64: 1, 3, 256>}, {transform_indices = @transform_2, window_bounds = array<i64: 1, 83, 256>}]} {
    %c0 = arith.constant 0 : index
    %c0_0 = arith.constant 0 : index
    %0 = vector.load %arg2[%c0, %c0_0] : memref<40x256xf32, #tpu.memory_space<vmem>>, vector<40x256xf32>
    %1 = math.sin %0 : vector<40x256xf32>
    %c0_1 = arith.constant 0 : index
    %c0_2 = arith.constant 0 : index
    %c0_3 = arith.constant 0 : index
    %2 = vector.load %arg4[%c0_1, %c0_2, %c0_3] : memref<1x83x256xf32, #tpu.memory_space<vmem>>, vector<1x40x256xf32>
    %3 = vector.shape_cast %2 : vector<1x40x256xf32> to vector<40x256xf32>
    %4 = vector.shape_cast %1 : vector<40x256xf32> to vector<1x40x256xf32>
    tpu.vector_store %arg4[%c0_1, %c0_2, %c0_3], %4 {strides = array<i32>} : memref<1x83x256xf32, #tpu.memory_space<vmem>>, vector<1x40x256xf32>,
    %5 = math.cos %0 : vector<40x256xf32>
    %c0_4 = arith.constant 0 : index
    %c40 = arith.constant 40 : index
    %c0_5 = arith.constant 0 : index
    %6 = vector.load %arg4[%c0_4, %c40, %c0_5] : memref<1x83x256xf32, #tpu.memory_space<vmem>>, vector<1x40x256xf32>
    %7 = vector.shape_cast %6 : vector<1x40x256xf32> to vector<40x256xf32>
    %8 = vector.shape_cast %5 : vector<40x256xf32> to vector<1x40x256xf32>
    tpu.vector_store %arg4[%c0_4, %c40, %c0_5], %8 {strides = array<i32>} : memref<1x83x256xf32, #tpu.memory_space<vmem>>, vector<1x40x256xf32>,
    %c0_6 = arith.constant 0 : index
    %c0_7 = arith.constant 0 : index
    %c0_8 = arith.constant 0 : index
    %9 = vector.load %arg3[%c0_6, %c0_7, %c0_8] : memref<1x3x256xf32, #tpu.memory_space<vmem>>, vector<1x3x256xf32>
    %10 = vector.shape_cast %9 : vector<1x3x256xf32> to vector<3x256xf32>
    %c0_9 = arith.constant 0 : index
    %c80 = arith.constant 80 : index
    %c0_10 = arith.constant 0 : index
    %11 = vector.load %arg4[%c0_9, %c80, %c0_10] : memref<1x83x256xf32, #tpu.memory_space<vmem>>, vector<1x3x256xf32>
    %12 = vector.shape_cast %11 : vector<1x3x256xf32> to vector<3x256xf32>
    %13 = vector.shape_cast %10 : vector<3x256xf32> to vector<1x3x256xf32>
    tpu.vector_store %arg4[%c0_9, %c80, %c0_10], %13 {strides = array<i32>} : memref<1x83x256xf32, #tpu.memory_space<vmem>>, vector<1x3x256xf32>,
    return
  }
  func.func @transform_0(%arg0: i32, %arg1: i32) -> (i32, i32) {
    %c0_i32 = arith.constant 0 : i32
    %c0_i32_0 = arith.constant 0 : i32
    return %c0_i32, %arg0 : i32, i32
  }
  func.func @transform_1(%arg0: i32, %arg1: i32) -> (i32, i32, i32) {
    %c0_i32 = arith.constant 0 : i32
    %c0_i32_0 = arith.constant 0 : i32
    return %arg1, %c0_i32, %arg0 : i32, i32, i32
  }
  func.func @transform_2(%arg0: i32, %arg1: i32) -> (i32, i32, i32) {
    %c0_i32 = arith.constant 0 : i32
    %c0_i32_0 = arith.constant 0 : i32
    return %arg1, %c0_i32, %arg0 : i32, i32, i32
  }
}

</mosaic_0001>

<llo_original>
// kernel: simple_implicit_featurizer.1
$region0: #{simple_implicit_featurizer.1}
  #allocation0 [shape = 'u32[]', space=smem, size = 0x4, offset = 0x4, fixed_abs, tag = 'smem constant byte address 0x4 - core index']
  #allocation1 [shape = 'u32[144,128]{1,0:T(1,128)}', space=vmem, size = 0x12000, scoped, tag = 'internal scratch']
  %s0 = inlined_call_operand.vmem [shape: f32[40,256], index: 0, kind: input, shape index: {}]
  %s1 = inlined_call_operand.vmem [shape: f32[2,3,256], index: 1, kind: input, shape index: {}]
  %s2 = inlined_call_operand.vmem [shape: f32[2,83,256], index: 2, kind: output, shape index: {}]
  %s3 = sld [smem:[#allocation0]]
  $region41: #{simple_implicit_featurizer.1} parent=0
    _
  %s5 = ssub.s32 1, %s3
  %s6 = scalar_select 0, %s5, %s3
  loop: start=0, step=1, limit=4
  $region2: #{simple_implicit_featurizer.1} parent=0 // loop_pre_header
    _
  $region3: #{simple_implicit_featurizer.1} parent=0 // loop_header
    %s8 = sphi 0, %s12
    %p9 = scmp.ge.s32.totalorder %s8, 4
    %s15 = sphi 0, %s27
    %s16 = sphi 0, %s23
    %s17 = sphi 0, %s15
    %s18 = sphi 0, %s16
    %s19 = sphi 0, %s17
    %s20 = sphi 0, %s18
    %s30 = sphi 0, %s32
    %s33 = sphi 0, %s30
    %s34 = sphi 0, %s33
    %s50 = sphi 0, %s34
    %s58 = sphi 0, %s60
    %s61 = sphi 0, %s58
    %s62 = sphi 0, %s61
    %s78 = sphi 0, %s62
    %s86 = sphi 0, %s88
    %s89 = sphi 0, %s86
    %s90 = sphi 0, %s89
    %s106 = sphi 0, %s90
  $region4: #{simple_implicit_featurizer.1} parent=0 // loop_header_branch
    %11 = sbr.rel (%p9) target = $region8
  $region5: #{simple_implicit_featurizer.1} parent=0 // loop_body
    %s13 = ssub.s32 %s8, 1
    %s14 = ssub.s32 %s8, 2
    %s21 = sadd.s32 1, %s16
    %p22 = scmp.ge.s32.totalorder %s21, 2
    %s23 = scalar_select %p22, 0, %s21
    %s24 = sadd.s32 1, %s15
    %s25 = scalar_select %p22, %s24, %s15
    %p26 = scmp.ge.s32.totalorder %s25, 1
    %s27 = scalar_select %p26, 0, %s25
    %s28 = ssub.s32 %s15, %s27
    %p29 = scmp.eq.s32.totalorder %s28, 0
    %s31 = sadd.s32 %s30, 1
    %s32 = scalar_select %p29, %s30, %s31
    %p35 = pneg %p29
    %p36 = scmp.eq.s32.totalorder %s8, 1
    %p37 = por %p35, %p36
    %p38 = scmp.ne.s32.totalorder %s30, %s33
    %p39 = scmp.eq.s32.totalorder %s8, 0
    %p40 = por %p38, %p39
    %p41 = scmp.ne.s32.totalorder %s30, %s33
    %p42 = scmp.eq.s32.totalorder %s13, 1
    %p43 = por %p41, %p42
    %p44 = scmp.ne.s32.totalorder %s33, %s34
    %p45 = scmp.eq.s32.totalorder %s13, 0
    %p46 = por %p44, %p45
    %p47 = scmp.ne.s32.totalorder %s33, %s34
    %p48 = scmp.eq.s32.totalorder %s14, 1
    %p49 = por %p47, %p48
    %p51 = scmp.ne.s32.totalorder %s34, %s50
    %p52 = scmp.eq.s32.totalorder %s14, 0
    %p53 = por %p51, %p52
    %s54 = ssub.s32 %s16, %s23
    %s55 = ssub.s32 %s15, %s27
    %s56 = sor.u32 %s54, %s55
    %p57 = scmp.eq.s32.totalorder %s56, 0
    %s59 = sadd.s32 %s58, 1
    %s60 = scalar_select %p57, %s58, %s59
    %p63 = pneg %p57
    %p64 = scmp.eq.s32.totalorder %s8, 1
    %p65 = por %p63, %p64
    %p66 = scmp.ne.s32.totalorder %s58, %s61
    %p67 = scmp.eq.s32.totalorder %s8, 0
    %p68 = por %p66, %p67
    %p69 = scmp.ne.s32.totalorder %s58, %s61
    %p70 = scmp.eq.s32.totalorder %s13, 1
    %p71 = por %p69, %p70
    %p72 = scmp.ne.s32.totalorder %s61, %s62
    %p73 = scmp.eq.s32.totalorder %s13, 0
    %p74 = por %p72, %p73
    %p75 = scmp.ne.s32.totalorder %s61, %s62
    %p76 = scmp.eq.s32.totalorder %s14, 1
    %p77 = por %p75, %p76
    %p79 = scmp.ne.s32.totalorder %s62, %s78
    %p80 = scmp.eq.s32.totalorder %s14, 0
    %p81 = por %p79, %p80
    %s82 = ssub.s32 %s16, %s23
    %s83 = ssub.s32 %s15, %s27
    %s84 = sor.u32 %s82, %s83
    %p85 = scmp.eq.s32.totalorder %s84, 0
    %s87 = sadd.s32 %s86, 1
    %s88 = scalar_select %p85, %s86, %s87
    %p91 = pneg %p85
    %p92 = scmp.eq.s32.totalorder %s8, 1
    %p93 = por %p91, %p92
    %p94 = scmp.ne.s32.totalorder %s86, %s89
    %p95 = scmp.eq.s32.totalorder %s8, 0
    %p96 = por %p94, %p95
    %p97 = scmp.ne.s32.totalorder %s86, %s89
    %p98 = scmp.eq.s32.totalorder %s13, 1
    %p99 = por %p97, %p98
    %p100 = scmp.ne.s32.totalorder %s89, %s90
    %p101 = scmp.eq.s32.totalorder %s13, 0
    %p102 = por %p100, %p101
    %p103 = scmp.ne.s32.totalorder %s89, %s90
    %p104 = scmp.eq.s32.totalorder %s14, 1
    %p105 = por %p103, %p104
    %p107 = scmp.ne.s32.totalorder %s90, %s106
    %p108 = scmp.eq.s32.totalorder %s14, 0
    %p109 = por %p107, %p108
    %p110 = scmp.le.s32.totalorder 1, %s8
    %p111 = scmp.lt.s32.totalorder %s8, 3
    %p112 = pnand %p110, %p111
    %p113 = pneg %p112
    // Predicated region
    $region9: #{simple_implicit_featurizer.1} parent=5 // pred_check
      _
    $region10: #{simple_implicit_featurizer.1} parent=5 // pred_check_branch
      %115 = sbr.rel (%p112) target = $region12
    $region11: #{simple_implicit_featurizer.1} parent=5 // pred_region
      %s116 = ssub.s32 %s8, 1
      // Predicated region
      $region13: #{simple_implicit_featurizer.1} parent=11 // pred_check
        %p117 = pneg %p46
      $region14: #{simple_implicit_featurizer.1} parent=11 // pred_check_branch
        %119 = sbr.rel (%p117) target = $region16
      $region15: #{simple_implicit_featurizer.1} parent=11 // pred_region
        %s120 = smul.u32 2, %s17
        %p121 = scmp.lt.s32.totalorder %s120, 1
        %s122 = scalar_select %p121, %s120, 1
        %s123 = smul.addr %s122, 8
        %s124 = scalar_lea.vmem %s0, %s123
        %s125 = smul.u32 2, %s17
      $region16: #{simple_implicit_featurizer.1} parent=11 // pred_fallthru
        _
    $region12: #{simple_implicit_featurizer.1} parent=5 // pred_fallthru
      _
    %p126 = scmp.lt.s32.totalorder %s8, 2
    // Predicated region
    $region17: #{simple_implicit_featurizer.1} parent=5 // pred_check
      %p127 = pneg %p126
    $region18: #{simple_implicit_featurizer.1} parent=5 // pred_check_branch
      %129 = sbr.rel (%p127) target = $region20
    $region19: #{simple_implicit_featurizer.1} parent=5 // pred_region
      // Predicated region
      $region21: #{simple_implicit_featurizer.1} parent=19 // pred_check
        %p130 = pneg %p68
      $region22: #{simple_implicit_featurizer.1} parent=19 // pred_check_branch
        %132 = sbr.rel (%p130) target = $region24
      $region23: #{simple_implicit_featurizer.1} parent=19 // pred_region
        %s133 = smul.u32 2, %s15
        %p134 = scmp.lt.s32.totalorder %s16, 1
        %s135 = scalar_select %p134, %s16, 1
        %p136 = scmp.lt.s32.totalorder %s133, 1
        %s137 = scalar_select %p136, %s133, 1
        %s138 = smul.addr %s135, 2
        %s139 = sadd.s32 %s137, %s138
        %s140 = smul.addr %s139, 4
        %s141 = scalar_lea.vmem %s1, %s140
        %s142 = smul.u32 2, %s15
      $region24: #{simple_implicit_featurizer.1} parent=19 // pred_fallthru
        _
    $region20: #{simple_implicit_featurizer.1} parent=5 // pred_fallthru
      _
    %p143 = scmp.le.s32.totalorder 1, %s8
    %p144 = scmp.lt.s32.totalorder %s8, 3
    %p145 = pnand %p143, %p144
    %p146 = pneg %p145
    // Predicated region
    $region25: #{simple_implicit_featurizer.1} parent=5 // pred_check
      _
    $region26: #{simple_implicit_featurizer.1} parent=5 // pred_check_branch
      %148 = sbr.rel (%p145) target = $region28
    $region27: #{simple_implicit_featurizer.1} parent=5 // pred_region
      %s149 = ssub.s32 %s8, 1
      %s150 = smul.u32 2, %s17
      %p151 = scmp.lt.s32.totalorder %s150, 1
      %s152 = scalar_select %p151, %s150, 1
      %s153 = smul.addr %s152, 8
      %s154 = scalar_lea.vmem %s0, %s153
      %p155 = pneg %p46
      %p156 = pneg %p43
      %s157 = smul.u32 2, %s17
      %p158 = scmp.lt.s32.totalorder %s18, 1
      %s159 = scalar_select %p158, %s18, 1
      %p160 = scmp.lt.s32.totalorder %s157, 1
      %s161 = scalar_select %p160, %s157, 1
      %s162 = smul.addr %s159, 2
      %s163 = sadd.s32 %s161, %s162
      %s164 = smul.addr %s163, 4
      %s165 = scalar_lea.vmem %s1, %s164
      %p166 = pneg %p74
      %p167 = pneg %p71
      %p168 = pneg %p102
      %p169 = pneg %p99
      %s170 = smul.u32 2, %s17
      %p171 = scmp.lt.s32.totalorder %s18, 1
      %s172 = scalar_select %p171, %s18, 1
      %p173 = scmp.lt.s32.totalorder %s170, 1
      %s174 = scalar_select %p173, %s170, 1
      %s175 = smul.addr %s172, 22
      %s176 = sadd.s32 %s174, %s175
      %s177 = smul.addr %s176, 8
      %s178 = scalar_lea.vmem %s2, %s177
      %s179 = smul.u32 2, %s17
      %p180 = scmp.lt.s32.totalorder %s179, 1
      %s181 = scalar_select %p180, %s179, 1
      %s182 = smul.addr %s181, 8
      %s183 = scalar_lea.vmem %s0, %s182
      %s184 = smul.u32 2, %s17
      %s185 = smul.u32 2, %s17
      %p186 = scmp.lt.s32.totalorder %s18, 1
      %s187 = scalar_select %p186, %s18, 1
      %p188 = scmp.lt.s32.totalorder %s185, 1
      %s189 = scalar_select %p188, %s185, 1
      %s190 = smul.addr %s187, 2
      %s191 = sadd.s32 %s189, %s190
      %s192 = smul.addr %s191, 4
      %s193 = scalar_lea.vmem %s1, %s192
      %s194 = smul.u32 2, %s17
      %s195 = smul.u32 2, %s17
      %p196 = scmp.lt.s32.totalorder %s18, 1
      %s197 = scalar_select %p196, %s18, 1
      %p198 = scmp.lt.s32.totalorder %s195, 1
      %s199 = scalar_select %p198, %s195, 1
      %s200 = smul.addr %s197, 22
      %s201 = sadd.s32 %s199, %s200
      %s202 = smul.addr %s201, 8
      %s203 = scalar_lea.vmem %s2, %s202
      %s204 = smul.u32 2, %s17
      %v205 = vld [vmem:[%s183] sm:$0xff]
      %v206 = vld [vmem:[%s183 + $0x8] sm:$0xff]
      %v207 = vld [vmem:[%s183 + $0x10] sm:$0xff]
      %v208 = vld [vmem:[%s183 + $0x18] sm:$0xff]
      %v209 = vld [vmem:[%s183 + $0x20] sm:$0xff]
      %v210 = vld [vmem:[%s183 + $0x28] sm:$0xff]
      %v211 = vld [vmem:[%s183 + $0x30] sm:$0xff]
      %v212 = vld [vmem:[%s183 + $0x38] sm:$0xff]
      %v213 = vld [vmem:[%s183 + $0x40] sm:$0xff]
      %v214 = vld [vmem:[%s183 + $0x48] sm:$0xff]
      %v215 = vand.u32 2147483647, %v205
      %vm216 = vcmp.le.f32.partialorder %v215, 0.7853982
      %vm217 = vcmp.lt.s32.totalorder %v205, 0
      %v218 = vand.u32 %v205, 2139095040
      %v219 = vshrl.u32 %v218, 23
      %v220 = vsub.s32 %v219, 127
      %v221 = vand.u32 2147483647, %v205
      %v222 = vand.u32 %v221, 8388607
      %v223 = vor.u32 %v222, 8388608
      %v224 = vsub.s32 0, %v223
      %v225 = vadd.s32 %v220, 1
      %vm226 = vcmp.gt.s32.totalorder %v225, 0
      %v227 = vsel %vm226, %v225, 0
      %v228 = vshrl.u32 %v227, 5
      %v229 = vand.u32 %v227, 31
      %v230 = vsub.s32 32, %v229
      %v231 = vshrl.u32 683565275, %v230
      %v232 = vshll.u32 683565275, %v229
      %v233 = vshrl.u32 2475754826, %v230
      %v234 = vor.u32 %v232, %v233
      %v235 = vshll.u32 2475754826, %v229
      %v236 = vshrl.u32 2131351028, %v230
      %v237 = vor.u32 %v235, %v236
      %v238 = vshll.u32 2131351028, %v229
      %v239 = vshrl.u32 2102212464, %v230
      %v240 = vor.u32 %v238, %v239
      %v241 = vshll.u32 2102212464, %v229
      %v242 = vshrl.u32 920167782, %v230
      %v243 = vor.u32 %v241, %v242
      %v244 = vshll.u32 920167782, %v229
      %v245 = vshrl.u32 1326507024, %v230
      %v246 = vor.u32 %v244, %v245
      %vm247 = vcmp.lt.s32.totalorder %v228, 1
      %vm248 = vcmp.lt.s32.totalorder %v228, 2
      %vm249 = vcmp.lt.s32.totalorder %v228, 3
      %vm250 = vcmp.lt.s32.totalorder %v228, 4
      %v251 = vsel %vm247, %v231, %v234
      %v252 = vsel %vm250, %v240, 2102212464
      %v253 = vsel %vm249, %v237, %v252
      %v254 = vsel %vm248, %v251, %v253
      %v255 = vsel %vm247, %v234, %v237
      %v256 = vsel %vm250, %v243, 920167782
      %v257 = vsel %vm249, %v240, %v256
      %v258 = vsel %vm248, %v255, %v257
      %v259 = vsel %vm247, %v237, %v240
      %v260 = vsel %vm250, %v246, 1326507024
      %v261 = vsel %vm249, %v243, %v260
      %v262 = vsel %vm248, %v259, %v261
      %v263 = vshll.u32 %v223, 8
      %v264 = vmul.u32.u64.compose %v263, %v262
      %v265 = vextract.low.u32 %v264
      %v266 = vextract.high.u32 %v264
      %v267 = vmul.u32.u64.compose %v263, %v258
      %v268 = vextract.low.u32 %v267
      %v269 = vextract.high.u32 %v267
      %v270 = vmul.u32 %v263, %v254
      %v271 = vadd.s32 %v266, %v268
      %vm272 = vc.u32 %v266, %v268
      %v273 = vadd.s32 %v269, 1
      %v274 = vsel %vm272, %v273, %v269
      %v275 = vadd.s32 %v270, %v274
      %v276 = vadd.s32 %v275, 536870912
      %v277 = vshrl.u32 %v276, 30
      %v278 = vshll.u32 %v277, 30
      %v279 = vsub.s32 %v275, %v278
      %vm280 = vcmp.lt.s32.totalorder %v279, 0
      %v281 = vsub.s32 0, %v279
      %v282 = vsel %vm280, %v281, %v279
      %v283 = vclz %v282
      %v284 = vsub.s32 %v283, 2
      %vm285 = vcmp.gt.s32.totalorder 0, %v284
      %v286 = vsel %vm285, 0, %v284
      %v287 = vsub.s32 32, %v286
      %v288 = vshll.u32 %v279, %v286
      %v289 = vshrl.u32 %v271, %v287
      %v290 = vor.u32 %v288, %v289
      %v291 = vsub.s32 4294967266, %v286
      %v292 = vadd.s32 %v291, 127
      %v293 = vshll.u32 %v292, 23
      %v294 = vor.u32 4788187, %v293
      %v295 = vand.u32 2147483647, %v294
      %v297 = vcvt.s32.f32 %v290
      %v298 = vmul.f32 %v297, %v295
      %v299 = vxor.u32 %v298, 2147483648
      %v300 = vsel %vm217, %v299, %v298
      %v301 = vsub.s32 4, %v277
      %v302 = vsel %vm217, %v301, %v277
      %v303 = vsel %vm216, %v205, %v300
      %v304 = vsel %vm216, 0, %v302
      %v305 = vcosq.f32.pop %v303
      %v306 = vsinq.f32.pop %v303
      %vm307 = vweird.f32 %v205
      %v308 = vadd.s32 %v304, 3
      %v309 = vand.u32 %v308, 3
      %vm310 = vcmp.lt.s32.totalorder %v309, 2
      %vm311 = vcmp.eq.s32.totalorder %v309, 0
      %v312 = vxor.u32 %v306, 2147483648
      %v313 = vsel %vm311, %v305, %v312
      %vm314 = vcmp.eq.s32.totalorder %v309, 2
      %v315 = vxor.u32 %v305, 2147483648
      %v316 = vsel %vm314, %v315, %v306
      %v317 = vsel %vm310, %v313, %v316
      %v318 = vsel %vm307, nan, %v317
      %v319 = vand.u32 2147483647, %v206
      %vm320 = vcmp.le.f32.partialorder %v319, 0.7853982
      %vm321 = vcmp.lt.s32.totalorder %v206, 0
      %v322 = vand.u32 %v206, 2139095040
      %v323 = vshrl.u32 %v322, 23
      %v324 = vsub.s32 %v323, 127
      %v325 = vand.u32 2147483647, %v206
      %v326 = vand.u32 %v325, 8388607
      %v327 = vor.u32 %v326, 8388608
      %v328 = vsub.s32 0, %v327
      %v329 = vadd.s32 %v324, 1
      %vm330 = vcmp.gt.s32.totalorder %v329, 0
      %v331 = vsel %vm330, %v329, 0
      %v332 = vshrl.u32 %v331, 5
      %v333 = vand.u32 %v331, 31
      %v334 = vsub.s32 32, %v333
      %v335 = vshrl.u32 683565275, %v334
      %v336 = vshll.u32 683565275, %v333
      %v337 = vshrl.u32 2475754826, %v334
      %v338 = vor.u32 %v336, %v337
      %v339 = vshll.u32 2475754826, %v333
      %v340 = vshrl.u32 2131351028, %v334
      %v341 = vor.u32 %v339, %v340
      %v342 = vshll.u32 2131351028, %v333
      %v343 = vshrl.u32 2102212464, %v334
      %v344 = vor.u32 %v342, %v343
      %v345 = vshll.u32 2102212464, %v333
      %v346 = vshrl.u32 920167782, %v334
      %v347 = vor.u32 %v345, %v346
      %v348 = vshll.u32 920167782, %v333
      %v349 = vshrl.u32 1326507024, %v334
      %v350 = vor.u32 %v348, %v349
      %vm351 = vcmp.lt.s32.totalorder %v332, 1
      %vm352 = vcmp.lt.s32.totalorder %v332, 2
      %vm353 = vcmp.lt.s32.totalorder %v332, 3
      %vm354 = vcmp.lt.s32.totalorder %v332, 4
      %v355 = vsel %vm351, %v335, %v338
      %v356 = vsel %vm354, %v344, 2102212464
      %v357 = vsel %vm353, %v341, %v356
      %v358 = vsel %vm352, %v355, %v357
      %v359 = vsel %vm351, %v338, %v341
      %v360 = vsel %vm354, %v347, 920167782
      %v361 = vsel %vm353, %v344, %v360
      %v362 = vsel %vm352, %v359, %v361
      %v363 = vsel %vm351, %v341, %v344
      %v364 = vsel %vm354, %v350, 1326507024
      %v365 = vsel %vm353, %v347, %v364
      %v366 = vsel %vm352, %v363, %v365
      %v367 = vshll.u32 %v327, 8
      %v368 = vmul.u32.u64.compose %v367, %v366
      %v369 = vextract.low.u32 %v368
      %v370 = vextract.high.u32 %v368
      %v371 = vmul.u32.u64.compose %v367, %v362
      %v372 = vextract.low.u32 %v371
      %v373 = vextract.high.u32 %v371
      %v374 = vmul.u32 %v367, %v358
      %v375 = vadd.s32 %v370, %v372
      %vm376 = vc.u32 %v370, %v372
      %v377 = vadd.s32 %v373, 1
      %v378 = vsel %vm376, %v377, %v373
      %v379 = vadd.s32 %v374, %v378
      %v380 = vadd.s32 %v379, 536870912
      %v381 = vshrl.u32 %v380, 30
      %v382 = vshll.u32 %v381, 30
      %v383 = vsub.s32 %v379, %v382
      %vm384 = vcmp.lt.s32.totalorder %v383, 0
      %v385 = vsub.s32 0, %v383
      %v386 = vsel %vm384, %v385, %v383
      %v387 = vclz %v386
      %v388 = vsub.s32 %v387, 2
      %vm389 = vcmp.gt.s32.totalorder 0, %v388
      %v390 = vsel %vm389, 0, %v388
      %v391 = vsub.s32 32, %v390
      %v392 = vshll.u32 %v383, %v390
      %v393 = vshrl.u32 %v375, %v391
      %v394 = vor.u32 %v392, %v393
      %v395 = vsub.s32 4294967266, %v390
      %v396 = vadd.s32 %v395, 127
      %v397 = vshll.u32 %v396, 23
      %v398 = vor.u32 4788187, %v397
      %v399 = vand.u32 2147483647, %v398
      %v401 = vcvt.s32.f32 %v394
      %v402 = vmul.f32 %v401, %v399
      %v403 = vxor.u32 %v402, 2147483648
      %v404 = vsel %vm321, %v403, %v402
      %v405 = vsub.s32 4, %v381
      %v406 = vsel %vm321, %v405, %v381
      %v407 = vsel %vm320, %v206, %v404
      %v408 = vsel %vm320, 0, %v406
      %v409 = vcosq.f32.pop %v407
      %v410 = vsinq.f32.pop %v407
      %vm411 = vweird.f32 %v206
      %v412 = vadd.s32 %v408, 3
      %v413 = vand.u32 %v412, 3
      %vm414 = vcmp.lt.s32.totalorder %v413, 2
      %vm415 = vcmp.eq.s32.totalorder %v413, 0
      %v416 = vxor.u32 %v410, 2147483648
      %v417 = vsel %vm415, %v409, %v416
      %vm418 = vcmp.eq.s32.totalorder %v413, 2
      %v419 = vxor.u32 %v409, 2147483648
      %v420 = vsel %vm418, %v419, %v410
      %v421 = vsel %vm414, %v417, %v420
      %v422 = vsel %vm411, nan, %v421
      %v423 = vand.u32 2147483647, %v207
      %vm424 = vcmp.le.f32.partialorder %v423, 0.7853982
      %vm425 = vcmp.lt.s32.totalorder %v207, 0
      %v426 = vand.u32 %v207, 2139095040
      %v427 = vshrl.u32 %v426, 23
      %v428 = vsub.s32 %v427, 127
      %v429 = vand.u32 2147483647, %v207
      %v430 = vand.u32 %v429, 8388607
      %v431 = vor.u32 %v430, 8388608
      %v432 = vsub.s32 0, %v431
      %v433 = vadd.s32 %v428, 1
      %vm434 = vcmp.gt.s32.totalorder %v433, 0
      %v435 = vsel %vm434, %v433, 0
      %v436 = vshrl.u32 %v435, 5
      %v437 = vand.u32 %v435, 31
      %v438 = vsub.s32 32, %v437
      %v439 = vshrl.u32 683565275, %v438
      %v440 = vshll.u32 683565275, %v437
      %v441 = vshrl.u32 2475754826, %v438
      %v442 = vor.u32 %v440, %v441
      %v443 = vshll.u32 2475754826, %v437
      %v444 = vshrl.u32 2131351028, %v438
      %v445 = vor.u32 %v443, %v444
      %v446 = vshll.u32 2131351028, %v437
      %v447 = vshrl.u32 2102212464, %v438
      %v448 = vor.u32 %v446, %v447
      %v449 = vshll.u32 2102212464, %v437
      %v450 = vshrl.u32 920167782, %v438
      %v451 = vor.u32 %v449, %v450
      %v452 = vshll.u32 920167782, %v437
      %v453 = vshrl.u32 1326507024, %v438
      %v454 = vor.u32 %v452, %v453
      %vm455 = vcmp.lt.s32.totalorder %v436, 1
      %vm456 = vcmp.lt.s32.totalorder %v436, 2
      %vm457 = vcmp.lt.s32.totalorder %v436, 3
      %vm458 = vcmp.lt.s32.totalorder %v436, 4
      %v459 = vsel %vm455, %v439, %v442
      %v460 = vsel %vm458, %v448, 2102212464
      %v461 = vsel %vm457, %v445, %v460
      %v462 = vsel %vm456, %v459, %v461
      %v463 = vsel %vm455, %v442, %v445
      %v464 = vsel %vm458, %v451, 920167782
      %v465 = vsel %vm457, %v448, %v464
      %v466 = vsel %vm456, %v463, %v465
      %v467 = vsel %vm455, %v445, %v448
      %v468 = vsel %vm458, %v454, 1326507024
      %v469 = vsel %vm457, %v451, %v468
      %v470 = vsel %vm456, %v467, %v469
      %v471 = vshll.u32 %v431, 8
      %v472 = vmul.u32.u64.compose %v471, %v470
      %v473 = vextract.low.u32 %v472
      %v474 = vextract.high.u32 %v472
      %v475 = vmul.u32.u64.compose %v471, %v466
      %v476 = vextract.low.u32 %v475
      %v477 = vextract.high.u32 %v475
      %v478 = vmul.u32 %v471, %v462
      %v479 = vadd.s32 %v474, %v476
      %vm480 = vc.u32 %v474, %v476
      %v481 = vadd.s32 %v477, 1
      %v482 = vsel %vm480, %v481, %v477
      %v483 = vadd.s32 %v478, %v482
      %v484 = vadd.s32 %v483, 536870912
      %v485 = vshrl.u32 %v484, 30
      %v486 = vshll.u32 %v485, 30
      %v487 = vsub.s32 %v483, %v486
      %vm488 = vcmp.lt.s32.totalorder %v487, 0
      %v489 = vsub.s32 0, %v487
      %v490 = vsel %vm488, %v489, %v487
      %v491 = vclz %v490
      %v492 = vsub.s32 %v491, 2
      %vm493 = vcmp.gt.s32.totalorder 0, %v492
      %v494 = vsel %vm493, 0, %v492
      %v495 = vsub.s32 32, %v494
      %v496 = vshll.u32 %v487, %v494
      %v497 = vshrl.u32 %v479, %v495
      %v498 = vor.u32 %v496, %v497
      %v499 = vsub.s32 4294967266, %v494
      %v500 = vadd.s32 %v499, 127
      %v501 = vshll.u32 %v500, 23
      %v502 = vor.u32 4788187, %v501
      %v503 = vand.u32 2147483647, %v502
      %v505 = vcvt.s32.f32 %v498
      %v506 = vmul.f32 %v505, %v503
      %v507 = vxor.u32 %v506, 2147483648
      %v508 = vsel %vm425, %v507, %v506
      %v509 = vsub.s32 4, %v485
      %v510 = vsel %vm425, %v509, %v485
      %v511 = vsel %vm424, %v207, %v508
      %v512 = vsel %vm424, 0, %v510
      %v513 = vcosq.f32.pop %v511
      %v514 = vsinq.f32.pop %v511
      %vm515 = vweird.f32 %v207
      %v516 = vadd.s32 %v512, 3
      %v517 = vand.u32 %v516, 3
      %vm518 = vcmp.lt.s32.totalorder %v517, 2
      %vm519 = vcmp.eq.s32.totalorder %v517, 0
      %v520 = vxor.u32 %v514, 2147483648
      %v521 = vsel %vm519, %v513, %v520
      %vm522 = vcmp.eq.s32.totalorder %v517, 2
      %v523 = vxor.u32 %v513, 2147483648
      %v524 = vsel %vm522, %v523, %v514
      %v525 = vsel %vm518, %v521, %v524
      %v526 = vsel %vm515, nan, %v525
      %v527 = vand.u32 2147483647, %v208
      %vm528 = vcmp.le.f32.partialorder %v527, 0.7853982
      %vm529 = vcmp.lt.s32.totalorder %v208, 0
      %v530 = vand.u32 %v208, 2139095040
      %v531 = vshrl.u32 %v530, 23
      %v532 = vsub.s32 %v531, 127
      %v533 = vand.u32 2147483647, %v208
      %v534 = vand.u32 %v533, 8388607
      %v535 = vor.u32 %v534, 8388608
      %v536 = vsub.s32 0, %v535
      %v537 = vadd.s32 %v532, 1
      %vm538 = vcmp.gt.s32.totalorder %v537, 0
      %v539 = vsel %vm538, %v537, 0
      %v540 = vshrl.u32 %v539, 5
      %v541 = vand.u32 %v539, 31
      %v542 = vsub.s32 32, %v541
      %v543 = vshrl.u32 683565275, %v542
      %v544 = vshll.u32 683565275, %v541
      %v545 = vshrl.u32 2475754826, %v542
      %v546 = vor.u32 %v544, %v545
      %v547 = vshll.u32 2475754826, %v541
      %v548 = vshrl.u32 2131351028, %v542
      %v549 = vor.u32 %v547, %v548
      %v550 = vshll.u32 2131351028, %v541
      %v551 = vshrl.u32 2102212464, %v542
      %v552 = vor.u32 %v550, %v551
      %v553 = vshll.u32 2102212464, %v541
      %v554 = vshrl.u32 920167782, %v542
      %v555 = vor.u32 %v553, %v554
      %v556 = vshll.u32 920167782, %v541
      %v557 = vshrl.u32 1326507024, %v542
      %v558 = vor.u32 %v556, %v557
      %vm559 = vcmp.lt.s32.totalorder %v540, 1
      %vm560 = vcmp.lt.s32.totalorder %v540, 2
      %vm561 = vcmp.lt.s32.totalorder %v540, 3
      %vm562 = vcmp.lt.s32.totalorder %v540, 4
      %v563 = vsel %vm559, %v543, %v546
      %v564 = vsel %vm562, %v552, 2102212464
      %v565 = vsel %vm561, %v549, %v564
      %v566 = vsel %vm560, %v563, %v565
      %v567 = vsel %vm559, %v546, %v549
      %v568 = vsel %vm562, %v555, 920167782
      %v569 = vsel %vm561, %v552, %v568
      %v570 = vsel %vm560, %v567, %v569
      %v571 = vsel %vm559, %v549, %v552
      %v572 = vsel %vm562, %v558, 1326507024
      %v573 = vsel %vm561, %v555, %v572
      %v574 = vsel %vm560, %v571, %v573
      %v575 = vshll.u32 %v535, 8
      %v576 = vmul.u32.u64.compose %v575, %v574
      %v577 = vextract.low.u32 %v576
      %v578 = vextract.high.u32 %v576
      %v579 = vmul.u32.u64.compose %v575, %v570
      %v580 = vextract.low.u32 %v579
      %v581 = vextract.high.u32 %v579
      %v582 = vmul.u32 %v575, %v566
      %v583 = vadd.s32 %v578, %v580
      %vm584 = vc.u32 %v578, %v580
      %v585 = vadd.s32 %v581, 1
      %v586 = vsel %vm584, %v585, %v581
      %v587 = vadd.s32 %v582, %v586
      %v588 = vadd.s32 %v587, 536870912
      %v589 = vshrl.u32 %v588, 30
      %v590 = vshll.u32 %v589, 30
      %v591 = vsub.s32 %v587, %v590
      %vm592 = vcmp.lt.s32.totalorder %v591, 0
      %v593 = vsub.s32 0, %v591
      %v594 = vsel %vm592, %v593, %v591
      %v595 = vclz %v594
      %v596 = vsub.s32 %v595, 2
      %vm597 = vcmp.gt.s32.totalorder 0, %v596
      %v598 = vsel %vm597, 0, %v596
      %v599 = vsub.s32 32, %v598
      %v600 = vshll.u32 %v591, %v598
      %v601 = vshrl.u32 %v583, %v599
      %v602 = vor.u32 %v600, %v601
      %v603 = vsub.s32 4294967266, %v598
      %v604 = vadd.s32 %v603, 127
      %v605 = vshll.u32 %v604, 23
      %v606 = vor.u32 4788187, %v605
      %v607 = vand.u32 2147483647, %v606
      %v609 = vcvt.s32.f32 %v602
      %v610 = vmul.f32 %v609, %v607
      %v611 = vxor.u32 %v610, 2147483648
      %v612 = vsel %vm529, %v611, %v610
      %v613 = vsub.s32 4, %v589
      %v614 = vsel %vm529, %v613, %v589
      %v615 = vsel %vm528, %v208, %v612
      %v616 = vsel %vm528, 0, %v614
      %v617 = vcosq.f32.pop %v615
      %v618 = vsinq.f32.pop %v615
      %vm619 = vweird.f32 %v208
      %v620 = vadd.s32 %v616, 3
      %v621 = vand.u32 %v620, 3
      %vm622 = vcmp.lt.s32.totalorder %v621, 2
      %vm623 = vcmp.eq.s32.totalorder %v621, 0
      %v624 = vxor.u32 %v618, 2147483648
      %v625 = vsel %vm623, %v617, %v624
      %vm626 = vcmp.eq.s32.totalorder %v621, 2
      %v627 = vxor.u32 %v617, 2147483648
      %v628 = vsel %vm626, %v627, %v618
      %v629 = vsel %vm622, %v625, %v628
      %v630 = vsel %vm619, nan, %v629
      %v631 = vand.u32 2147483647, %v209
      %vm632 = vcmp.le.f32.partialorder %v631, 0.7853982
      %vm633 = vcmp.lt.s32.totalorder %v209, 0
      %v634 = vand.u32 %v209, 2139095040
      %v635 = vshrl.u32 %v634, 23
      %v636 = vsub.s32 %v635, 127
      %v637 = vand.u32 2147483647, %v209
      %v638 = vand.u32 %v637, 8388607
      %v639 = vor.u32 %v638, 8388608
      %v640 = vsub.s32 0, %v639
      %v641 = vadd.s32 %v636, 1
      %vm642 = vcmp.gt.s32.totalorder %v641, 0
      %v643 = vsel %vm642, %v641, 0
      %v644 = vshrl.u32 %v643, 5
      %v645 = vand.u32 %v643, 31
      %v646 = vsub.s32 32, %v645
      %v647 = vshrl.u32 683565275, %v646
      %v648 = vshll.u32 683565275, %v645
      %v649 = vshrl.u32 2475754826, %v646
      %v650 = vor.u32 %v648, %v649
      %v651 = vshll.u32 2475754826, %v645
      %v652 = vshrl.u32 2131351028, %v646
      %v653 = vor.u32 %v651, %v652
      %v654 = vshll.u32 2131351028, %v645
      %v655 = vshrl.u32 2102212464, %v646
      %v656 = vor.u32 %v654, %v655
      %v657 = vshll.u32 2102212464, %v645
      %v658 = vshrl.u32 920167782, %v646
      %v659 = vor.u32 %v657, %v658
      %v660 = vshll.u32 920167782, %v645
      %v661 = vshrl.u32 1326507024, %v646
      %v662 = vor.u32 %v660, %v661
      %vm663 = vcmp.lt.s32.totalorder %v644, 1
      %vm664 = vcmp.lt.s32.totalorder %v644, 2
      %vm665 = vcmp.lt.s32.totalorder %v644, 3
      %vm666 = vcmp.lt.s32.totalorder %v644, 4
      %v667 = vsel %vm663, %v647, %v650
      %v668 = vsel %vm666, %v656, 2102212464
      %v669 = vsel %vm665, %v653, %v668
      %v670 = vsel %vm664, %v667, %v669
      %v671 = vsel %vm663, %v650, %v653
      %v672 = vsel %vm666, %v659, 920167782
      %v673 = vsel %vm665, %v656, %v672
      %v674 = vsel %vm664, %v671, %v673
      %v675 = vsel %vm663, %v653, %v656
      %v676 = vsel %vm666, %v662, 1326507024
      %v677 = vsel %vm665, %v659, %v676
      %v678 = vsel %vm664, %v675, %v677
      %v679 = vshll.u32 %v639, 8
      %v680 = vmul.u32.u64.compose %v679, %v678
      %v681 = vextract.low.u32 %v680
      %v682 = vextract.high.u32 %v680
      %v683 = vmul.u32.u64.compose %v679, %v674
      %v684 = vextract.low.u32 %v683
      %v685 = vextract.high.u32 %v683
      %v686 = vmul.u32 %v679, %v670
      %v687 = vadd.s32 %v682, %v684
      %vm688 = vc.u32 %v682, %v684
      %v689 = vadd.s32 %v685, 1
      %v690 = vsel %vm688, %v689, %v685
      %v691 = vadd.s32 %v686, %v690
      %v692 = vadd.s32 %v691, 536870912
      %v693 = vshrl.u32 %v692, 30
      %v694 = vshll.u32 %v693, 30
      %v695 = vsub.s32 %v691, %v694
      %vm696 = vcmp.lt.s32.totalorder %v695, 0
      %v697 = vsub.s32 0, %v695
      %v698 = vsel %vm696, %v697, %v695
      %v699 = vclz %v698
      %v700 = vsub.s32 %v699, 2
      %vm701 = vcmp.gt.s32.totalorder 0, %v700
      %v702 = vsel %vm701, 0, %v700
      %v703 = vsub.s32 32, %v702
      %v704 = vshll.u32 %v695, %v702
      %v705 = vshrl.u32 %v687, %v703
      %v706 = vor.u32 %v704, %v705
      %v707 = vsub.s32 4294967266, %v702
      %v708 = vadd.s32 %v707, 127
      %v709 = vshll.u32 %v708, 23
      %v710 = vor.u32 4788187, %v709
      %v711 = vand.u32 2147483647, %v710
      %v713 = vcvt.s32.f32 %v706
      %v714 = vmul.f32 %v713, %v711
      %v715 = vxor.u32 %v714, 2147483648
      %v716 = vsel %vm633, %v715, %v714
      %v717 = vsub.s32 4, %v693
      %v718 = vsel %vm633, %v717, %v693
      %v719 = vsel %vm632, %v209, %v716
      %v720 = vsel %vm632, 0, %v718
      %v721 = vcosq.f32.pop %v719
      %v722 = vsinq.f32.pop %v719
      %vm723 = vweird.f32 %v209
      %v724 = vadd.s32 %v720, 3
      %v725 = vand.u32 %v724, 3
      %vm726 = vcmp.lt.s32.totalorder %v725, 2
      %vm727 = vcmp.eq.s32.totalorder %v725, 0
      %v728 = vxor.u32 %v722, 2147483648
      %v729 = vsel %vm727, %v721, %v728
      %vm730 = vcmp.eq.s32.totalorder %v725, 2
      %v731 = vxor.u32 %v721, 2147483648
      %v732 = vsel %vm730, %v731, %v722
      %v733 = vsel %vm726, %v729, %v732
      %v734 = vsel %vm723, nan, %v733
      %v735 = vand.u32 2147483647, %v210
      %vm736 = vcmp.le.f32.partialorder %v735, 0.7853982
      %vm737 = vcmp.lt.s32.totalorder %v210, 0
      %v738 = vand.u32 %v210, 2139095040
      %v739 = vshrl.u32 %v738, 23
      %v740 = vsub.s32 %v739, 127
      %v741 = vand.u32 2147483647, %v210
      %v742 = vand.u32 %v741, 8388607
      %v743 = vor.u32 %v742, 8388608
      %v744 = vsub.s32 0, %v743
      %v745 = vadd.s32 %v740, 1
      %vm746 = vcmp.gt.s32.totalorder %v745, 0
      %v747 = vsel %vm746, %v745, 0
      %v748 = vshrl.u32 %v747, 5
      %v749 = vand.u32 %v747, 31
      %v750 = vsub.s32 32, %v749
      %v751 = vshrl.u32 683565275, %v750
      %v752 = vshll.u32 683565275, %v749
      %v753 = vshrl.u32 2475754826, %v750
      %v754 = vor.u32 %v752, %v753
      %v755 = vshll.u32 2475754826, %v749
      %v756 = vshrl.u32 2131351028, %v750
      %v757 = vor.u32 %v755, %v756
      %v758 = vshll.u32 2131351028, %v749
      %v759 = vshrl.u32 2102212464, %v750
      %v760 = vor.u32 %v758, %v759
      %v761 = vshll.u32 2102212464, %v749
      %v762 = vshrl.u32 920167782, %v750
      %v763 = vor.u32 %v761, %v762
      %v764 = vshll.u32 920167782, %v749
      %v765 = vshrl.u32 1326507024, %v750
      %v766 = vor.u32 %v764, %v765
      %vm767 = vcmp.lt.s32.totalorder %v748, 1
      %vm768 = vcmp.lt.s32.totalorder %v748, 2
      %vm769 = vcmp.lt.s32.totalorder %v748, 3
      %vm770 = vcmp.lt.s32.totalorder %v748, 4
      %v771 = vsel %vm767, %v751, %v754
      %v772 = vsel %vm770, %v760, 2102212464
      %v773 = vsel %vm769, %v757, %v772
      %v774 = vsel %vm768, %v771, %v773
      %v775 = vsel %vm767, %v754, %v757
      %v776 = vsel %vm770, %v763, 920167782
      %v777 = vsel %vm769, %v760, %v776
      %v778 = vsel %vm768, %v775, %v777
      %v779 = vsel %vm767, %v757, %v760
      %v780 = vsel %vm770, %v766, 1326507024
      %v781 = vsel %vm769, %v763, %v780
      %v782 = vsel %vm768, %v779, %v781
      %v783 = vshll.u32 %v743, 8
      %v784 = vmul.u32.u64.compose %v783, %v782
      %v785 = vextract.low.u32 %v784
      %v786 = vextract.high.u32 %v784
      %v787 = vmul.u32.u64.compose %v783, %v778
      %v788 = vextract.low.u32 %v787
      %v789 = vextract.high.u32 %v787
      %v790 = vmul.u32 %v783, %v774
      %v791 = vadd.s32 %v786, %v788
      %vm792 = vc.u32 %v786, %v788
      %v793 = vadd.s32 %v789, 1
      %v794 = vsel %vm792, %v793, %v789
      %v795 = vadd.s32 %v790, %v794
      %v796 = vadd.s32 %v795, 536870912
      %v797 = vshrl.u32 %v796, 30
      %v798 = vshll.u32 %v797, 30
      %v799 = vsub.s32 %v795, %v798
      %vm800 = vcmp.lt.s32.totalorder %v799, 0
      %v801 = vsub.s32 0, %v799
      %v802 = vsel %vm800, %v801, %v799
      %v803 = vclz %v802
      %v804 = vsub.s32 %v803, 2
      %vm805 = vcmp.gt.s32.totalorder 0, %v804
      %v806 = vsel %vm805, 0, %v804
      %v807 = vsub.s32 32, %v806
      %v808 = vshll.u32 %v799, %v806
      %v809 = vshrl.u32 %v791, %v807
      %v810 = vor.u32 %v808, %v809
      %v811 = vsub.s32 4294967266, %v806
      %v812 = vadd.s32 %v811, 127
      %v813 = vshll.u32 %v812, 23
      %v814 = vor.u32 4788187, %v813
      %v815 = vand.u32 2147483647, %v814
      %v817 = vcvt.s32.f32 %v810
      %v818 = vmul.f32 %v817, %v815
      %v819 = vxor.u32 %v818, 2147483648
      %v820 = vsel %vm737, %v819, %v818
      %v821 = vsub.s32 4, %v797
      %v822 = vsel %vm737, %v821, %v797
      %v823 = vsel %vm736, %v210, %v820
      %v824 = vsel %vm736, 0, %v822
      %v825 = vcosq.f32.pop %v823
      %v826 = vsinq.f32.pop %v823
      %vm827 = vweird.f32 %v210
      %v828 = vadd.s32 %v824, 3
      %v829 = vand.u32 %v828, 3
      %vm830 = vcmp.lt.s32.totalorder %v829, 2
      %vm831 = vcmp.eq.s32.totalorder %v829, 0
      %v832 = vxor.u32 %v826, 2147483648
      %v833 = vsel %vm831, %v825, %v832
      %vm834 = vcmp.eq.s32.totalorder %v829, 2
      %v835 = vxor.u32 %v825, 2147483648
      %v836 = vsel %vm834, %v835, %v826
      %v837 = vsel %vm830, %v833, %v836
      %v838 = vsel %vm827, nan, %v837
      %v839 = vand.u32 2147483647, %v211
      %vm840 = vcmp.le.f32.partialorder %v839, 0.7853982
      %vm841 = vcmp.lt.s32.totalorder %v211, 0
      %v842 = vand.u32 %v211, 2139095040
      %v843 = vshrl.u32 %v842, 23
      %v844 = vsub.s32 %v843, 127
      %v845 = vand.u32 2147483647, %v211
      %v846 = vand.u32 %v845, 8388607
      %v847 = vor.u32 %v846, 8388608
      %v848 = vsub.s32 0, %v847
      %v849 = vadd.s32 %v844, 1
      %vm850 = vcmp.gt.s32.totalorder %v849, 0
      %v851 = vsel %vm850, %v849, 0
      %v852 = vshrl.u32 %v851, 5
      %v853 = vand.u32 %v851, 31
      %v854 = vsub.s32 32, %v853
      %v855 = vshrl.u32 683565275, %v854
      %v856 = vshll.u32 683565275, %v853
      %v857 = vshrl.u32 2475754826, %v854
      %v858 = vor.u32 %v856, %v857
      %v859 = vshll.u32 2475754826, %v853
      %v860 = vshrl.u32 2131351028, %v854
      %v861 = vor.u32 %v859, %v860
      %v862 = vshll.u32 2131351028, %v853
      %v863 = vshrl.u32 2102212464, %v854
      %v864 = vor.u32 %v862, %v863
      %v865 = vshll.u32 2102212464, %v853
      %v866 = vshrl.u32 920167782, %v854
      %v867 = vor.u32 %v865, %v866
      %v868 = vshll.u32 920167782, %v853
      %v869 = vshrl.u32 1326507024, %v854
      %v870 = vor.u32 %v868, %v869
      %vm871 = vcmp.lt.s32.totalorder %v852, 1
      %vm872 = vcmp.lt.s32.totalorder %v852, 2
      %vm873 = vcmp.lt.s32.totalorder %v852, 3
      %vm874 = vcmp.lt.s32.totalorder %v852, 4
      %v875 = vsel %vm871, %v855, %v858
      %v876 = vsel %vm874, %v864, 2102212464
      %v877 = vsel %vm873, %v861, %v876
      %v878 = vsel %vm872, %v875, %v877
      %v879 = vsel %vm871, %v858, %v861
      %v880 = vsel %vm874, %v867, 920167782
      %v881 = vsel %vm873, %v864, %v880
      %v882 = vsel %vm872, %v879, %v881
      %v883 = vsel %vm871, %v861, %v864
      %v884 = vsel %vm874, %v870, 1326507024
      %v885 = vsel %vm873, %v867, %v884
      %v886 = vsel %vm872, %v883, %v885
      %v887 = vshll.u32 %v847, 8
      %v888 = vmul.u32.u64.compose %v887, %v886
      %v889 = vextract.low.u32 %v888
      %v890 = vextract.high.u32 %v888
      %v891 = vmul.u32.u64.compose %v887, %v882
      %v892 = vextract.low.u32 %v891
      %v893 = vextract.high.u32 %v891
      %v894 = vmul.u32 %v887, %v878
      %v895 = vadd.s32 %v890, %v892
      %vm896 = vc.u32 %v890, %v892
      %v897 = vadd.s32 %v893, 1
      %v898 = vsel %vm896, %v897, %v893
      %v899 = vadd.s32 %v894, %v898
      %v900 = vadd.s32 %v899, 536870912
      %v901 = vshrl.u32 %v900, 30
      %v902 = vshll.u32 %v901, 30
      %v903 = vsub.s32 %v899, %v902
      %vm904 = vcmp.lt.s32.totalorder %v903, 0
      %v905 = vsub.s32 0, %v903
      %v906 = vsel %vm904, %v905, %v903
      %v907 = vclz %v906
      %v908 = vsub.s32 %v907, 2
      %vm909 = vcmp.gt.s32.totalorder 0, %v908
      %v910 = vsel %vm909, 0, %v908
      %v911 = vsub.s32 32, %v910
      %v912 = vshll.u32 %v903, %v910
      %v913 = vshrl.u32 %v895, %v911
      %v914 = vor.u32 %v912, %v913
      %v915 = vsub.s32 4294967266, %v910
      %v916 = vadd.s32 %v915, 127
      %v917 = vshll.u32 %v916, 23
      %v918 = vor.u32 4788187, %v917
      %v919 = vand.u32 2147483647, %v918
      %v921 = vcvt.s32.f32 %v914
      %v922 = vmul.f32 %v921, %v919
      %v923 = vxor.u32 %v922, 2147483648
      %v924 = vsel %vm841, %v923, %v922
      %v925 = vsub.s32 4, %v901
      %v926 = vsel %vm841, %v925, %v901
      %v927 = vsel %vm840, %v211, %v924
      %v928 = vsel %vm840, 0, %v926
      %v929 = vcosq.f32.pop %v927
      %v930 = vsinq.f32.pop %v927
      %vm931 = vweird.f32 %v211
      %v932 = vadd.s32 %v928, 3
      %v933 = vand.u32 %v932, 3
      %vm934 = vcmp.lt.s32.totalorder %v933, 2
      %vm935 = vcmp.eq.s32.totalorder %v933, 0
      %v936 = vxor.u32 %v930, 2147483648
      %v937 = vsel %vm935, %v929, %v936
      %vm938 = vcmp.eq.s32.totalorder %v933, 2
      %v939 = vxor.u32 %v929, 2147483648
      %v940 = vsel %vm938, %v939, %v930
      %v941 = vsel %vm934, %v937, %v940
      %v942 = vsel %vm931, nan, %v941
      %v943 = vand.u32 2147483647, %v212
      %vm944 = vcmp.le.f32.partialorder %v943, 0.7853982
      %vm945 = vcmp.lt.s32.totalorder %v212, 0
      %v946 = vand.u32 %v212, 2139095040
      %v947 = vshrl.u32 %v946, 23
      %v948 = vsub.s32 %v947, 127
      %v949 = vand.u32 2147483647, %v212
      %v950 = vand.u32 %v949, 8388607
      %v951 = vor.u32 %v950, 8388608
      %v952 = vsub.s32 0, %v951
      %v953 = vadd.s32 %v948, 1
      %vm954 = vcmp.gt.s32.totalorder %v953, 0
      %v955 = vsel %vm954, %v953, 0
      %v956 = vshrl.u32 %v955, 5
      %v957 = vand.u32 %v955, 31
      %v958 = vsub.s32 32, %v957
      %v959 = vshrl.u32 683565275, %v958
      %v960 = vshll.u32 683565275, %v957
      %v961 = vshrl.u32 2475754826, %v958
      %v962 = vor.u32 %v960, %v961
      %v963 = vshll.u32 2475754826, %v957
      %v964 = vshrl.u32 2131351028, %v958
      %v965 = vor.u32 %v963, %v964
      %v966 = vshll.u32 2131351028, %v957
      %v967 = vshrl.u32 2102212464, %v958
      %v968 = vor.u32 %v966, %v967
      %v969 = vshll.u32 2102212464, %v957
      %v970 = vshrl.u32 920167782, %v958
      %v971 = vor.u32 %v969, %v970
      %v972 = vshll.u32 920167782, %v957
      %v973 = vshrl.u32 1326507024, %v958
      %v974 = vor.u32 %v972, %v973
      %vm975 = vcmp.lt.s32.totalorder %v956, 1
      %vm976 = vcmp.lt.s32.totalorder %v956, 2
      %vm977 = vcmp.lt.s32.totalorder %v956, 3
      %vm978 = vcmp.lt.s32.totalorder %v956, 4
      %v979 = vsel %vm975, %v959, %v962
      %v980 = vsel %vm978, %v968, 2102212464
      %v981 = vsel %vm977, %v965, %v980
      %v982 = vsel %vm976, %v979, %v981
      %v983 = vsel %vm975, %v962, %v965
      %v984 = vsel %vm978, %v971, 920167782
      %v985 = vsel %vm977, %v968, %v984
      %v986 = vsel %vm976, %v983, %v985
      %v987 = vsel %vm975, %v965, %v968
      %v988 = vsel %vm978, %v974, 1326507024
      %v989 = vsel %vm977, %v971, %v988
      %v990 = vsel %vm976, %v987, %v989
      %v991 = vshll.u32 %v951, 8
      %v992 = vmul.u32.u64.compose %v991, %v990
      %v993 = vextract.low.u32 %v992
      %v994 = vextract.high.u32 %v992
      %v995 = vmul.u32.u64.compose %v991, %v986
      %v996 = vextract.low.u32 %v995
      %v997 = vextract.high.u32 %v995
      %v998 = vmul.u32 %v991, %v982
      %v999 = vadd.s32 %v994, %v996
      %vm1000 = vc.u32 %v994, %v996
      %v1001 = vadd.s32 %v997, 1
      %v1002 = vsel %vm1000, %v1001, %v997
      %v1003 = vadd.s32 %v998, %v1002
      %v1004 = vadd.s32 %v1003, 536870912
      %v1005 = vshrl.u32 %v1004, 30
      %v1006 = vshll.u32 %v1005, 30
      %v1007 = vsub.s32 %v1003, %v1006
      %vm1008 = vcmp.lt.s32.totalorder %v1007, 0
      %v1009 = vsub.s32 0, %v1007
      %v1010 = vsel %vm1008, %v1009, %v1007
      %v1011 = vclz %v1010
      %v1012 = vsub.s32 %v1011, 2
      %vm1013 = vcmp.gt.s32.totalorder 0, %v1012
      %v1014 = vsel %vm1013, 0, %v1012
      %v1015 = vsub.s32 32, %v1014
      %v1016 = vshll.u32 %v1007, %v1014
      %v1017 = vshrl.u32 %v999, %v1015
      %v1018 = vor.u32 %v1016, %v1017
      %v1019 = vsub.s32 4294967266, %v1014
      %v1020 = vadd.s32 %v1019, 127
      %v1021 = vshll.u32 %v1020, 23
      %v1022 = vor.u32 4788187, %v1021
      %v1023 = vand.u32 2147483647, %v1022
      %v1025 = vcvt.s32.f32 %v1018
      %v1026 = vmul.f32 %v1025, %v1023
      %v1027 = vxor.u32 %v1026, 2147483648
      %v1028 = vsel %vm945, %v1027, %v1026
      %v1029 = vsub.s32 4, %v1005
      %v1030 = vsel %vm945, %v1029, %v1005
      %v1031 = vsel %vm944, %v212, %v1028
      %v1032 = vsel %vm944, 0, %v1030
      %v1033 = vcosq.f32.pop %v1031
      %v1034 = vsinq.f32.pop %v1031
      %vm1035 = vweird.f32 %v212
      %v1036 = vadd.s32 %v1032, 3
      %v1037 = vand.u32 %v1036, 3
      %vm1038 = vcmp.lt.s32.totalorder %v1037, 2
      %vm1039 = vcmp.eq.s32.totalorder %v1037, 0
      %v1040 = vxor.u32 %v1034, 2147483648
      %v1041 = vsel %vm1039, %v1033, %v1040
      %vm1042 = vcmp.eq.s32.totalorder %v1037, 2
      %v1043 = vxor.u32 %v1033, 2147483648
      %v1044 = vsel %vm1042, %v1043, %v1034
      %v1045 = vsel %vm1038, %v1041, %v1044
      %v1046 = vsel %vm1035, nan, %v1045
      %v1047 = vand.u32 2147483647, %v213
      %vm1048 = vcmp.le.f32.partialorder %v1047, 0.7853982
      %vm1049 = vcmp.lt.s32.totalorder %v213, 0
      %v1050 = vand.u32 %v213, 2139095040
      %v1051 = vshrl.u32 %v1050, 23
      %v1052 = vsub.s32 %v1051, 127
      %v1053 = vand.u32 2147483647, %v213
      %v1054 = vand.u32 %v1053, 8388607
      %v1055 = vor.u32 %v1054, 8388608
      %v1056 = vsub.s32 0, %v1055
      %v1057 = vadd.s32 %v1052, 1
      %vm1058 = vcmp.gt.s32.totalorder %v1057, 0
      %v1059 = vsel %vm1058, %v1057, 0
      %v1060 = vshrl.u32 %v1059, 5
      %v1061 = vand.u32 %v1059, 31
      %v1062 = vsub.s32 32, %v1061
      %v1063 = vshrl.u32 683565275, %v1062
      %v1064 = vshll.u32 683565275, %v1061
      %v1065 = vshrl.u32 2475754826, %v1062
      %v1066 = vor.u32 %v1064, %v1065
      %v1067 = vshll.u32 2475754826, %v1061
      %v1068 = vshrl.u32 2131351028, %v1062
      %v1069 = vor.u32 %v1067, %v1068
      %v1070 = vshll.u32 2131351028, %v1061
      %v1071 = vshrl.u32 2102212464, %v1062
      %v1072 = vor.u32 %v1070, %v1071
      %v1073 = vshll.u32 2102212464, %v1061
      %v1074 = vshrl.u32 920167782, %v1062
      %v1075 = vor.u32 %v1073, %v1074
      %v1076 = vshll.u32 920167782, %v1061
      %v1077 = vshrl.u32 1326507024, %v1062
      %v1078 = vor.u32 %v1076, %v1077
      %vm1079 = vcmp.lt.s32.totalorder %v1060, 1
      %vm1080 = vcmp.lt.s32.totalorder %v1060, 2
      %vm1081 = vcmp.lt.s32.totalorder %v1060, 3
      %vm1082 = vcmp.lt.s32.totalorder %v1060, 4
      %v1083 = vsel %vm1079, %v1063, %v1066
      %v1084 = vsel %vm1082, %v1072, 2102212464
      %v1085 = vsel %vm1081, %v1069, %v1084
      %v1086 = vsel %vm1080, %v1083, %v1085
      %v1087 = vsel %vm1079, %v1066, %v1069
      %v1088 = vsel %vm1082, %v1075, 920167782
      %v1089 = vsel %vm1081, %v1072, %v1088
      %v1090 = vsel %vm1080, %v1087, %v1089
      %v1091 = vsel %vm1079, %v1069, %v1072
      %v1092 = vsel %vm1082, %v1078, 1326507024
      %v1093 = vsel %vm1081, %v1075, %v1092
      %v1094 = vsel %vm1080, %v1091, %v1093
      %v1095 = vshll.u32 %v1055, 8
      %v1096 = vmul.u32.u64.compose %v1095, %v1094
      %v1097 = vextract.low.u32 %v1096
      %v1098 = vextract.high.u32 %v1096
      %v1099 = vmul.u32.u64.compose %v1095, %v1090
      %v1100 = vextract.low.u32 %v1099
      %v1101 = vextract.high.u32 %v1099
      %v1102 = vmul.u32 %v1095, %v1086
      %v1103 = vadd.s32 %v1098, %v1100
      %vm1104 = vc.u32 %v1098, %v1100
      %v1105 = vadd.s32 %v1101, 1
      %v1106 = vsel %vm1104, %v1105, %v1101
      %v1107 = vadd.s32 %v1102, %v1106
      %v1108 = vadd.s32 %v1107, 536870912
      %v1109 = vshrl.u32 %v1108, 30
      %v1110 = vshll.u32 %v1109, 30
      %v1111 = vsub.s32 %v1107, %v1110
      %vm1112 = vcmp.lt.s32.totalorder %v1111, 0
      %v1113 = vsub.s32 0, %v1111
      %v1114 = vsel %vm1112, %v1113, %v1111
      %v1115 = vclz %v1114
      %v1116 = vsub.s32 %v1115, 2
      %vm1117 = vcmp.gt.s32.totalorder 0, %v1116
      %v1118 = vsel %vm1117, 0, %v1116
      %v1119 = vsub.s32 32, %v1118
      %v1120 = vshll.u32 %v1111, %v1118
      %v1121 = vshrl.u32 %v1103, %v1119
      %v1122 = vor.u32 %v1120, %v1121
      %v1123 = vsub.s32 4294967266, %v1118
      %v1124 = vadd.s32 %v1123, 127
      %v1125 = vshll.u32 %v1124, 23
      %v1126 = vor.u32 4788187, %v1125
      %v1127 = vand.u32 2147483647, %v1126
      %v1129 = vcvt.s32.f32 %v1122
      %v1130 = vmul.f32 %v1129, %v1127
      %v1131 = vxor.u32 %v1130, 2147483648
      %v1132 = vsel %vm1049, %v1131, %v1130
      %v1133 = vsub.s32 4, %v1109
      %v1134 = vsel %vm1049, %v1133, %v1109
      %v1135 = vsel %vm1048, %v213, %v1132
      %v1136 = vsel %vm1048, 0, %v1134
      %v1137 = vcosq.f32.pop %v1135
      %v1138 = vsinq.f32.pop %v1135
      %vm1139 = vweird.f32 %v213
      %v1140 = vadd.s32 %v1136, 3
      %v1141 = vand.u32 %v1140, 3
      %vm1142 = vcmp.lt.s32.totalorder %v1141, 2
      %vm1143 = vcmp.eq.s32.totalorder %v1141, 0
      %v1144 = vxor.u32 %v1138, 2147483648
      %v1145 = vsel %vm1143, %v1137, %v1144
      %vm1146 = vcmp.eq.s32.totalorder %v1141, 2
      %v1147 = vxor.u32 %v1137, 2147483648
      %v1148 = vsel %vm1146, %v1147, %v1138
      %v1149 = vsel %vm1142, %v1145, %v1148
      %v1150 = vsel %vm1139, nan, %v1149
      %v1151 = vand.u32 2147483647, %v214
      %vm1152 = vcmp.le.f32.partialorder %v1151, 0.7853982
      %vm1153 = vcmp.lt.s32.totalorder %v214, 0
      %v1154 = vand.u32 %v214, 2139095040
      %v1155 = vshrl.u32 %v1154, 23
      %v1156 = vsub.s32 %v1155, 127
      %v1157 = vand.u32 2147483647, %v214
      %v1158 = vand.u32 %v1157, 8388607
      %v1159 = vor.u32 %v1158, 8388608
      %v1160 = vsub.s32 0, %v1159
      %v1161 = vadd.s32 %v1156, 1
      %vm1162 = vcmp.gt.s32.totalorder %v1161, 0
      %v1163 = vsel %vm1162, %v1161, 0
      %v1164 = vshrl.u32 %v1163, 5
      %v1165 = vand.u32 %v1163, 31
      %v1166 = vsub.s32 32, %v1165
      %v1167 = vshrl.u32 683565275, %v1166
      %v1168 = vshll.u32 683565275, %v1165
      %v1169 = vshrl.u32 2475754826, %v1166
      %v1170 = vor.u32 %v1168, %v1169
      %v1171 = vshll.u32 2475754826, %v1165
      %v1172 = vshrl.u32 2131351028, %v1166
      %v1173 = vor.u32 %v1171, %v1172
      %v1174 = vshll.u32 2131351028, %v1165
      %v1175 = vshrl.u32 2102212464, %v1166
      %v1176 = vor.u32 %v1174, %v1175
      %v1177 = vshll.u32 2102212464, %v1165
      %v1178 = vshrl.u32 920167782, %v1166
      %v1179 = vor.u32 %v1177, %v1178
      %v1180 = vshll.u32 920167782, %v1165
      %v1181 = vshrl.u32 1326507024, %v1166
      %v1182 = vor.u32 %v1180, %v1181
      %vm1183 = vcmp.lt.s32.totalorder %v1164, 1
      %vm1184 = vcmp.lt.s32.totalorder %v1164, 2
      %vm1185 = vcmp.lt.s32.totalorder %v1164, 3
      %vm1186 = vcmp.lt.s32.totalorder %v1164, 4
      %v1187 = vsel %vm1183, %v1167, %v1170
      %v1188 = vsel %vm1186, %v1176, 2102212464
      %v1189 = vsel %vm1185, %v1173, %v1188
      %v1190 = vsel %vm1184, %v1187, %v1189
      %v1191 = vsel %vm1183, %v1170, %v1173
      %v1192 = vsel %vm1186, %v1179, 920167782
      %v1193 = vsel %vm1185, %v1176, %v1192
      %v1194 = vsel %vm1184, %v1191, %v1193
      %v1195 = vsel %vm1183, %v1173, %v1176
      %v1196 = vsel %vm1186, %v1182, 1326507024
      %v1197 = vsel %vm1185, %v1179, %v1196
      %v1198 = vsel %vm1184, %v1195, %v1197
      %v1199 = vshll.u32 %v1159, 8
      %v1200 = vmul.u32.u64.compose %v1199, %v1198
      %v1201 = vextract.low.u32 %v1200
      %v1202 = vextract.high.u32 %v1200
      %v1203 = vmul.u32.u64.compose %v1199, %v1194
      %v1204 = vextract.low.u32 %v1203
      %v1205 = vextract.high.u32 %v1203
      %v1206 = vmul.u32 %v1199, %v1190
      %v1207 = vadd.s32 %v1202, %v1204
      %vm1208 = vc.u32 %v1202, %v1204
      %v1209 = vadd.s32 %v1205, 1
      %v1210 = vsel %vm1208, %v1209, %v1205
      %v1211 = vadd.s32 %v1206, %v1210
      %v1212 = vadd.s32 %v1211, 536870912
      %v1213 = vshrl.u32 %v1212, 30
      %v1214 = vshll.u32 %v1213, 30
      %v1215 = vsub.s32 %v1211, %v1214
      %vm1216 = vcmp.lt.s32.totalorder %v1215, 0
      %v1217 = vsub.s32 0, %v1215
      %v1218 = vsel %vm1216, %v1217, %v1215
      %v1219 = vclz %v1218
      %v1220 = vsub.s32 %v1219, 2
      %vm1221 = vcmp.gt.s32.totalorder 0, %v1220
      %v1222 = vsel %vm1221, 0, %v1220
      %v1223 = vsub.s32 32, %v1222
      %v1224 = vshll.u32 %v1215, %v1222
      %v1225 = vshrl.u32 %v1207, %v1223
      %v1226 = vor.u32 %v1224, %v1225
      %v1227 = vsub.s32 4294967266, %v1222
      %v1228 = vadd.s32 %v1227, 127
      %v1229 = vshll.u32 %v1228, 23
      %v1230 = vor.u32 4788187, %v1229
      %v1231 = vand.u32 2147483647, %v1230
      %v1233 = vcvt.s32.f32 %v1226
      %v1234 = vmul.f32 %v1233, %v1231
      %v1235 = vxor.u32 %v1234, 2147483648
      %v1236 = vsel %vm1153, %v1235, %v1234
      %v1237 = vsub.s32 4, %v1213
      %v1238 = vsel %vm1153, %v1237, %v1213
      %v1239 = vsel %vm1152, %v214, %v1236
      %v1240 = vsel %vm1152, 0, %v1238
      %v1241 = vcosq.f32.pop %v1239
      %v1242 = vsinq.f32.pop %v1239
      %vm1243 = vweird.f32 %v214
      %v1244 = vadd.s32 %v1240, 3
      %v1245 = vand.u32 %v1244, 3
      %vm1246 = vcmp.lt.s32.totalorder %v1245, 2
      %vm1247 = vcmp.eq.s32.totalorder %v1245, 0
      %v1248 = vxor.u32 %v1242, 2147483648
      %v1249 = vsel %vm1247, %v1241, %v1248
      %vm1250 = vcmp.eq.s32.totalorder %v1245, 2
      %v1251 = vxor.u32 %v1241, 2147483648
      %v1252 = vsel %vm1250, %v1251, %v1242
      %v1253 = vsel %vm1246, %v1249, %v1252
      %v1254 = vsel %vm1243, nan, %v1253
      %1255 = vst [vmem:[%s203] sm:$0xff] %v318
      %1256 = vst [vmem:[%s203 + $0x8] sm:$0xff] %v422
      %1257 = vst [vmem:[%s203 + $0x10] sm:$0xff] %v526
      %1258 = vst [vmem:[%s203 + $0x18] sm:$0xff] %v630
      %1259 = vst [vmem:[%s203 + $0x20] sm:$0xff] %v734
      %1260 = vst [vmem:[%s203 + $0x28] sm:$0xff] %v838
      %1261 = vst [vmem:[%s203 + $0x30] sm:$0xff] %v942
      %1262 = vst [vmem:[%s203 + $0x38] sm:$0xff] %v1046
      %1263 = vst [vmem:[%s203 + $0x40] sm:$0xff] %v1150
      %1264 = vst [vmem:[%s203 + $0x48] sm:$0xff] %v1254
      %v1265 = vand.u32 2147483647, %v205
      %vm1266 = vcmp.le.f32.partialorder %v1265, 0.7853982
      %vm1267 = vcmp.lt.s32.totalorder %v205, 0
      %v1268 = vand.u32 %v205, 2139095040
      %v1269 = vshrl.u32 %v1268, 23
      %v1270 = vsub.s32 %v1269, 127
      %v1271 = vand.u32 2147483647, %v205
      %v1272 = vand.u32 %v1271, 8388607
      %v1273 = vor.u32 %v1272, 8388608
      %v1274 = vsub.s32 0, %v1273
      %v1275 = vadd.s32 %v1270, 1
      %vm1276 = vcmp.gt.s32.totalorder %v1275, 0
      %v1277 = vsel %vm1276, %v1275, 0
      %v1278 = vshrl.u32 %v1277, 5
      %v1279 = vand.u32 %v1277, 31
      %v1280 = vsub.s32 32, %v1279
      %v1281 = vshrl.u32 683565275, %v1280
      %v1282 = vshll.u32 683565275, %v1279
      %v1283 = vshrl.u32 2475754826, %v1280
      %v1284 = vor.u32 %v1282, %v1283
      %v1285 = vshll.u32 2475754826, %v1279
      %v1286 = vshrl.u32 2131351028, %v1280
      %v1287 = vor.u32 %v1285, %v1286
      %v1288 = vshll.u32 2131351028, %v1279
      %v1289 = vshrl.u32 2102212464, %v1280
      %v1290 = vor.u32 %v1288, %v1289
      %v1291 = vshll.u32 2102212464, %v1279
      %v1292 = vshrl.u32 920167782, %v1280
      %v1293 = vor.u32 %v1291, %v1292
      %v1294 = vshll.u32 920167782, %v1279
      %v1295 = vshrl.u32 1326507024, %v1280
      %v1296 = vor.u32 %v1294, %v1295
      %vm1297 = vcmp.lt.s32.totalorder %v1278, 1
      %vm1298 = vcmp.lt.s32.totalorder %v1278, 2
      %vm1299 = vcmp.lt.s32.totalorder %v1278, 3
      %vm1300 = vcmp.lt.s32.totalorder %v1278, 4
      %v1301 = vsel %vm1297, %v1281, %v1284
      %v1302 = vsel %vm1300, %v1290, 2102212464
      %v1303 = vsel %vm1299, %v1287, %v1302
      %v1304 = vsel %vm1298, %v1301, %v1303
      %v1305 = vsel %vm1297, %v1284, %v1287
      %v1306 = vsel %vm1300, %v1293, 920167782
      %v1307 = vsel %vm1299, %v1290, %v1306
      %v1308 = vsel %vm1298, %v1305, %v1307
      %v1309 = vsel %vm1297, %v1287, %v1290
      %v1310 = vsel %vm1300, %v1296, 1326507024
      %v1311 = vsel %vm1299, %v1293, %v1310
      %v1312 = vsel %vm1298, %v1309, %v1311
      %v1313 = vshll.u32 %v1273, 8
      %v1314 = vmul.u32.u64.compose %v1313, %v1312
      %v1315 = vextract.low.u32 %v1314
      %v1316 = vextract.high.u32 %v1314
      %v1317 = vmul.u32.u64.compose %v1313, %v1308
      %v1318 = vextract.low.u32 %v1317
      %v1319 = vextract.high.u32 %v1317
      %v1320 = vmul.u32 %v1313, %v1304
      %v1321 = vadd.s32 %v1316, %v1318
      %vm1322 = vc.u32 %v1316, %v1318
      %v1323 = vadd.s32 %v1319, 1
      %v1324 = vsel %vm1322, %v1323, %v1319
      %v1325 = vadd.s32 %v1320, %v1324
      %v1326 = vadd.s32 %v1325, 536870912
      %v1327 = vshrl.u32 %v1326, 30
      %v1328 = vshll.u32 %v1327, 30
      %v1329 = vsub.s32 %v1325, %v1328
      %vm1330 = vcmp.lt.s32.totalorder %v1329, 0
      %v1331 = vsub.s32 0, %v1329
      %v1332 = vsel %vm1330, %v1331, %v1329
      %v1333 = vclz %v1332
      %v1334 = vsub.s32 %v1333, 2
      %vm1335 = vcmp.gt.s32.totalorder 0, %v1334
      %v1336 = vsel %vm1335, 0, %v1334
      %v1337 = vsub.s32 32, %v1336
      %v1338 = vshll.u32 %v1329, %v1336
      %v1339 = vshrl.u32 %v1321, %v1337
      %v1340 = vor.u32 %v1338, %v1339
      %v1341 = vsub.s32 4294967266, %v1336
      %v1342 = vadd.s32 %v1341, 127
      %v1343 = vshll.u32 %v1342, 23
      %v1344 = vor.u32 4788187, %v1343
      %v1345 = vand.u32 2147483647, %v1344
      %v1347 = vcvt.s32.f32 %v1340
      %v1348 = vmul.f32 %v1347, %v1345
      %v1349 = vxor.u32 %v1348, 2147483648
      %v1350 = vsel %vm1267, %v1349, %v1348
      %v1351 = vsub.s32 4, %v1327
      %v1352 = vsel %vm1267, %v1351, %v1327
      %v1353 = vsel %vm1266, %v205, %v1350
      %v1354 = vsel %vm1266, 0, %v1352
      %v1355 = vcosq.f32.pop %v1353
      %v1356 = vsinq.f32.pop %v1353
      %vm1357 = vweird.f32 %v205
      %v1358 = vand.u32 %v1354, 3
      %vm1359 = vcmp.lt.s32.totalorder %v1358, 2
      %vm1360 = vcmp.eq.s32.totalorder %v1358, 0
      %v1361 = vxor.u32 %v1356, 2147483648
      %v1362 = vsel %vm1360, %v1355, %v1361
      %vm1363 = vcmp.eq.s32.totalorder %v1358, 2
      %v1364 = vxor.u32 %v1355, 2147483648
      %v1365 = vsel %vm1363, %v1364, %v1356
      %v1366 = vsel %vm1359, %v1362, %v1365
      %v1367 = vsel %vm1357, nan, %v1366
      %v1368 = vand.u32 2147483647, %v206
      %vm1369 = vcmp.le.f32.partialorder %v1368, 0.7853982
      %vm1370 = vcmp.lt.s32.totalorder %v206, 0
      %v1371 = vand.u32 %v206, 2139095040
      %v1372 = vshrl.u32 %v1371, 23
      %v1373 = vsub.s32 %v1372, 127
      %v1374 = vand.u32 2147483647, %v206
      %v1375 = vand.u32 %v1374, 8388607
      %v1376 = vor.u32 %v1375, 8388608
      %v1377 = vsub.s32 0, %v1376
      %v1378 = vadd.s32 %v1373, 1
      %vm1379 = vcmp.gt.s32.totalorder %v1378, 0
      %v1380 = vsel %vm1379, %v1378, 0
      %v1381 = vshrl.u32 %v1380, 5
      %v1382 = vand.u32 %v1380, 31
      %v1383 = vsub.s32 32, %v1382
      %v1384 = vshrl.u32 683565275, %v1383
      %v1385 = vshll.u32 683565275, %v1382
      %v1386 = vshrl.u32 2475754826, %v1383
      %v1387 = vor.u32 %v1385, %v1386
      %v1388 = vshll.u32 2475754826, %v1382
      %v1389 = vshrl.u32 2131351028, %v1383
      %v1390 = vor.u32 %v1388, %v1389
      %v1391 = vshll.u32 2131351028, %v1382
      %v1392 = vshrl.u32 2102212464, %v1383
      %v1393 = vor.u32 %v1391, %v1392
      %v1394 = vshll.u32 2102212464, %v1382
      %v1395 = vshrl.u32 920167782, %v1383
      %v1396 = vor.u32 %v1394, %v1395
      %v1397 = vshll.u32 920167782, %v1382
      %v1398 = vshrl.u32 1326507024, %v1383
      %v1399 = vor.u32 %v1397, %v1398
      %vm1400 = vcmp.lt.s32.totalorder %v1381, 1
      %vm1401 = vcmp.lt.s32.totalorder %v1381, 2
      %vm1402 = vcmp.lt.s32.totalorder %v1381, 3
      %vm1403 = vcmp.lt.s32.totalorder %v1381, 4
      %v1404 = vsel %vm1400, %v1384, %v1387
      %v1405 = vsel %vm1403, %v1393, 2102212464
      %v1406 = vsel %vm1402, %v1390, %v1405
      %v1407 = vsel %vm1401, %v1404, %v1406
      %v1408 = vsel %vm1400, %v1387, %v1390
      %v1409 = vsel %vm1403, %v1396, 920167782
      %v1410 = vsel %vm1402, %v1393, %v1409
      %v1411 = vsel %vm1401, %v1408, %v1410
      %v1412 = vsel %vm1400, %v1390, %v1393
      %v1413 = vsel %vm1403, %v1399, 1326507024
      %v1414 = vsel %vm1402, %v1396, %v1413
      %v1415 = vsel %vm1401, %v1412, %v1414
      %v1416 = vshll.u32 %v1376, 8
      %v1417 = vmul.u32.u64.compose %v1416, %v1415
      %v1418 = vextract.low.u32 %v1417
      %v1419 = vextract.high.u32 %v1417
      %v1420 = vmul.u32.u64.compose %v1416, %v1411
      %v1421 = vextract.low.u32 %v1420
      %v1422 = vextract.high.u32 %v1420
      %v1423 = vmul.u32 %v1416, %v1407
      %v1424 = vadd.s32 %v1419, %v1421
      %vm1425 = vc.u32 %v1419, %v1421
      %v1426 = vadd.s32 %v1422, 1
      %v1427 = vsel %vm1425, %v1426, %v1422
      %v1428 = vadd.s32 %v1423, %v1427
      %v1429 = vadd.s32 %v1428, 536870912
      %v1430 = vshrl.u32 %v1429, 30
      %v1431 = vshll.u32 %v1430, 30
      %v1432 = vsub.s32 %v1428, %v1431
      %vm1433 = vcmp.lt.s32.totalorder %v1432, 0
      %v1434 = vsub.s32 0, %v1432
      %v1435 = vsel %vm1433, %v1434, %v1432
      %v1436 = vclz %v1435
      %v1437 = vsub.s32 %v1436, 2
      %vm1438 = vcmp.gt.s32.totalorder 0, %v1437
      %v1439 = vsel %vm1438, 0, %v1437
      %v1440 = vsub.s32 32, %v1439
      %v1441 = vshll.u32 %v1432, %v1439
      %v1442 = vshrl.u32 %v1424, %v1440
      %v1443 = vor.u32 %v1441, %v1442
      %v1444 = vsub.s32 4294967266, %v1439
      %v1445 = vadd.s32 %v1444, 127
      %v1446 = vshll.u32 %v1445, 23
      %v1447 = vor.u32 4788187, %v1446
      %v1448 = vand.u32 2147483647, %v1447
      %v1450 = vcvt.s32.f32 %v1443
      %v1451 = vmul.f32 %v1450, %v1448
      %v1452 = vxor.u32 %v1451, 2147483648
      %v1453 = vsel %vm1370, %v1452, %v1451
      %v1454 = vsub.s32 4, %v1430
      %v1455 = vsel %vm1370, %v1454, %v1430
      %v1456 = vsel %vm1369, %v206, %v1453
      %v1457 = vsel %vm1369, 0, %v1455
      %v1458 = vcosq.f32.pop %v1456
      %v1459 = vsinq.f32.pop %v1456
      %vm1460 = vweird.f32 %v206
      %v1461 = vand.u32 %v1457, 3
      %vm1462 = vcmp.lt.s32.totalorder %v1461, 2
      %vm1463 = vcmp.eq.s32.totalorder %v1461, 0
      %v1464 = vxor.u32 %v1459, 2147483648
      %v1465 = vsel %vm1463, %v1458, %v1464
      %vm1466 = vcmp.eq.s32.totalorder %v1461, 2
      %v1467 = vxor.u32 %v1458, 2147483648
      %v1468 = vsel %vm1466, %v1467, %v1459
      %v1469 = vsel %vm1462, %v1465, %v1468
      %v1470 = vsel %vm1460, nan, %v1469
      %v1471 = vand.u32 2147483647, %v207
      %vm1472 = vcmp.le.f32.partialorder %v1471, 0.7853982
      %vm1473 = vcmp.lt.s32.totalorder %v207, 0
      %v1474 = vand.u32 %v207, 2139095040
      %v1475 = vshrl.u32 %v1474, 23
      %v1476 = vsub.s32 %v1475, 127
      %v1477 = vand.u32 2147483647, %v207
      %v1478 = vand.u32 %v1477, 8388607
      %v1479 = vor.u32 %v1478, 8388608
      %v1480 = vsub.s32 0, %v1479
      %v1481 = vadd.s32 %v1476, 1
      %vm1482 = vcmp.gt.s32.totalorder %v1481, 0
      %v1483 = vsel %vm1482, %v1481, 0
      %v1484 = vshrl.u32 %v1483, 5
      %v1485 = vand.u32 %v1483, 31
      %v1486 = vsub.s32 32, %v1485
      %v1487 = vshrl.u32 683565275, %v1486
      %v1488 = vshll.u32 683565275, %v1485
      %v1489 = vshrl.u32 2475754826, %v1486
      %v1490 = vor.u32 %v1488, %v1489
      %v1491 = vshll.u32 2475754826, %v1485
      %v1492 = vshrl.u32 2131351028, %v1486
      %v1493 = vor.u32 %v1491, %v1492
      %v1494 = vshll.u32 2131351028, %v1485
      %v1495 = vshrl.u32 2102212464, %v1486
      %v1496 = vor.u32 %v1494, %v1495
      %v1497 = vshll.u32 2102212464, %v1485
      %v1498 = vshrl.u32 920167782, %v1486
      %v1499 = vor.u32 %v1497, %v1498
      %v1500 = vshll.u32 920167782, %v1485
      %v1501 = vshrl.u32 1326507024, %v1486
      %v1502 = vor.u32 %v1500, %v1501
      %vm1503 = vcmp.lt.s32.totalorder %v1484, 1
      %vm1504 = vcmp.lt.s32.totalorder %v1484, 2
      %vm1505 = vcmp.lt.s32.totalorder %v1484, 3
      %vm1506 = vcmp.lt.s32.totalorder %v1484, 4
      %v1507 = vsel %vm1503, %v1487, %v1490
      %v1508 = vsel %vm1506, %v1496, 2102212464
      %v1509 = vsel %vm1505, %v1493, %v1508
      %v1510 = vsel %vm1504, %v1507, %v1509
      %v1511 = vsel %vm1503, %v1490, %v1493
      %v1512 = vsel %vm1506, %v1499, 920167782
      %v1513 = vsel %vm1505, %v1496, %v1512
      %v1514 = vsel %vm1504, %v1511, %v1513
      %v1515 = vsel %vm1503, %v1493, %v1496
      %v1516 = vsel %vm1506, %v1502, 1326507024
      %v1517 = vsel %vm1505, %v1499, %v1516
      %v1518 = vsel %vm1504, %v1515, %v1517
      %v1519 = vshll.u32 %v1479, 8
      %v1520 = vmul.u32.u64.compose %v1519, %v1518
      %v1521 = vextract.low.u32 %v1520
      %v1522 = vextract.high.u32 %v1520
      %v1523 = vmul.u32.u64.compose %v1519, %v1514
      %v1524 = vextract.low.u32 %v1523
      %v1525 = vextract.high.u32 %v1523
      %v1526 = vmul.u32 %v1519, %v1510
      %v1527 = vadd.s32 %v1522, %v1524
      %vm1528 = vc.u32 %v1522, %v1524
      %v1529 = vadd.s32 %v1525, 1
      %v1530 = vsel %vm1528, %v1529, %v1525
      %v1531 = vadd.s32 %v1526, %v1530
      %v1532 = vadd.s32 %v1531, 536870912
      %v1533 = vshrl.u32 %v1532, 30
      %v1534 = vshll.u32 %v1533, 30
      %v1535 = vsub.s32 %v1531, %v1534
      %vm1536 = vcmp.lt.s32.totalorder %v1535, 0
      %v1537 = vsub.s32 0, %v1535
      %v1538 = vsel %vm1536, %v1537, %v1535
      %v1539 = vclz %v1538
      %v1540 = vsub.s32 %v1539, 2
      %vm1541 = vcmp.gt.s32.totalorder 0, %v1540
      %v1542 = vsel %vm1541, 0, %v1540
      %v1543 = vsub.s32 32, %v1542
      %v1544 = vshll.u32 %v1535, %v1542
      %v1545 = vshrl.u32 %v1527, %v1543
      %v1546 = vor.u32 %v1544, %v1545
      %v1547 = vsub.s32 4294967266, %v1542
      %v1548 = vadd.s32 %v1547, 127
      %v1549 = vshll.u32 %v1548, 23
      %v1550 = vor.u32 4788187, %v1549
      %v1551 = vand.u32 2147483647, %v1550
      %v1553 = vcvt.s32.f32 %v1546
      %v1554 = vmul.f32 %v1553, %v1551
      %v1555 = vxor.u32 %v1554, 2147483648
      %v1556 = vsel %vm1473, %v1555, %v1554
      %v1557 = vsub.s32 4, %v1533
      %v1558 = vsel %vm1473, %v1557, %v1533
      %v1559 = vsel %vm1472, %v207, %v1556
      %v1560 = vsel %vm1472, 0, %v1558
      %v1561 = vcosq.f32.pop %v1559
      %v1562 = vsinq.f32.pop %v1559
      %vm1563 = vweird.f32 %v207
      %v1564 = vand.u32 %v1560, 3
      %vm1565 = vcmp.lt.s32.totalorder %v1564, 2
      %vm1566 = vcmp.eq.s32.totalorder %v1564, 0
      %v1567 = vxor.u32 %v1562, 2147483648
      %v1568 = vsel %vm1566, %v1561, %v1567
      %vm1569 = vcmp.eq.s32.totalorder %v1564, 2
      %v1570 = vxor.u32 %v1561, 2147483648
      %v1571 = vsel %vm1569, %v1570, %v1562
      %v1572 = vsel %vm1565, %v1568, %v1571
      %v1573 = vsel %vm1563, nan, %v1572
      %v1574 = vand.u32 2147483647, %v208
      %vm1575 = vcmp.le.f32.partialorder %v1574, 0.7853982
      %vm1576 = vcmp.lt.s32.totalorder %v208, 0
      %v1577 = vand.u32 %v208, 2139095040
      %v1578 = vshrl.u32 %v1577, 23
      %v1579 = vsub.s32 %v1578, 127
      %v1580 = vand.u32 2147483647, %v208
      %v1581 = vand.u32 %v1580, 8388607
      %v1582 = vor.u32 %v1581, 8388608
      %v1583 = vsub.s32 0, %v1582
      %v1584 = vadd.s32 %v1579, 1
      %vm1585 = vcmp.gt.s32.totalorder %v1584, 0
      %v1586 = vsel %vm1585, %v1584, 0
      %v1587 = vshrl.u32 %v1586, 5
      %v1588 = vand.u32 %v1586, 31
      %v1589 = vsub.s32 32, %v1588
      %v1590 = vshrl.u32 683565275, %v1589
      %v1591 = vshll.u32 683565275, %v1588
      %v1592 = vshrl.u32 2475754826, %v1589
      %v1593 = vor.u32 %v1591, %v1592
      %v1594 = vshll.u32 2475754826, %v1588
      %v1595 = vshrl.u32 2131351028, %v1589
      %v1596 = vor.u32 %v1594, %v1595
      %v1597 = vshll.u32 2131351028, %v1588
      %v1598 = vshrl.u32 2102212464, %v1589
      %v1599 = vor.u32 %v1597, %v1598
      %v1600 = vshll.u32 2102212464, %v1588
      %v1601 = vshrl.u32 920167782, %v1589
      %v1602 = vor.u32 %v1600, %v1601
      %v1603 = vshll.u32 920167782, %v1588
      %v1604 = vshrl.u32 1326507024, %v1589
      %v1605 = vor.u32 %v1603, %v1604
      %vm1606 = vcmp.lt.s32.totalorder %v1587, 1
      %vm1607 = vcmp.lt.s32.totalorder %v1587, 2
      %vm1608 = vcmp.lt.s32.totalorder %v1587, 3
      %vm1609 = vcmp.lt.s32.totalorder %v1587, 4
      %v1610 = vsel %vm1606, %v1590, %v1593
      %v1611 = vsel %vm1609, %v1599, 2102212464
      %v1612 = vsel %vm1608, %v1596, %v1611
      %v1613 = vsel %vm1607, %v1610, %v1612
      %v1614 = vsel %vm1606, %v1593, %v1596
      %v1615 = vsel %vm1609, %v1602, 920167782
      %v1616 = vsel %vm1608, %v1599, %v1615
      %v1617 = vsel %vm1607, %v1614, %v1616
      %v1618 = vsel %vm1606, %v1596, %v1599
      %v1619 = vsel %vm1609, %v1605, 1326507024
      %v1620 = vsel %vm1608, %v1602, %v1619
      %v1621 = vsel %vm1607, %v1618, %v1620
      %v1622 = vshll.u32 %v1582, 8
      %v1623 = vmul.u32.u64.compose %v1622, %v1621
      %v1624 = vextract.low.u32 %v1623
      %v1625 = vextract.high.u32 %v1623
      %v1626 = vmul.u32.u64.compose %v1622, %v1617
      %v1627 = vextract.low.u32 %v1626
      %v1628 = vextract.high.u32 %v1626
      %v1629 = vmul.u32 %v1622, %v1613
      %v1630 = vadd.s32 %v1625, %v1627
      %vm1631 = vc.u32 %v1625, %v1627
      %v1632 = vadd.s32 %v1628, 1
      %v1633 = vsel %vm1631, %v1632, %v1628
      %v1634 = vadd.s32 %v1629, %v1633
      %v1635 = vadd.s32 %v1634, 536870912
      %v1636 = vshrl.u32 %v1635, 30
      %v1637 = vshll.u32 %v1636, 30
      %v1638 = vsub.s32 %v1634, %v1637
      %vm1639 = vcmp.lt.s32.totalorder %v1638, 0
      %v1640 = vsub.s32 0, %v1638
      %v1641 = vsel %vm1639, %v1640, %v1638
      %v1642 = vclz %v1641
      %v1643 = vsub.s32 %v1642, 2
      %vm1644 = vcmp.gt.s32.totalorder 0, %v1643
      %v1645 = vsel %vm1644, 0, %v1643
      %v1646 = vsub.s32 32, %v1645
      %v1647 = vshll.u32 %v1638, %v1645
      %v1648 = vshrl.u32 %v1630, %v1646
      %v1649 = vor.u32 %v1647, %v1648
      %v1650 = vsub.s32 4294967266, %v1645
      %v1651 = vadd.s32 %v1650, 127
      %v1652 = vshll.u32 %v1651, 23
      %v1653 = vor.u32 4788187, %v1652
      %v1654 = vand.u32 2147483647, %v1653
      %v1656 = vcvt.s32.f32 %v1649
      %v1657 = vmul.f32 %v1656, %v1654
      %v1658 = vxor.u32 %v1657, 2147483648
      %v1659 = vsel %vm1576, %v1658, %v1657
      %v1660 = vsub.s32 4, %v1636
      %v1661 = vsel %vm1576, %v1660, %v1636
      %v1662 = vsel %vm1575, %v208, %v1659
      %v1663 = vsel %vm1575, 0, %v1661
      %v1664 = vcosq.f32.pop %v1662
      %v1665 = vsinq.f32.pop %v1662
      %vm1666 = vweird.f32 %v208
      %v1667 = vand.u32 %v1663, 3
      %vm1668 = vcmp.lt.s32.totalorder %v1667, 2
      %vm1669 = vcmp.eq.s32.totalorder %v1667, 0
      %v1670 = vxor.u32 %v1665, 2147483648
      %v1671 = vsel %vm1669, %v1664, %v1670
      %vm1672 = vcmp.eq.s32.totalorder %v1667, 2
      %v1673 = vxor.u32 %v1664, 2147483648
      %v1674 = vsel %vm1672, %v1673, %v1665
      %v1675 = vsel %vm1668, %v1671, %v1674
      %v1676 = vsel %vm1666, nan, %v1675
      %v1677 = vand.u32 2147483647, %v209
      %vm1678 = vcmp.le.f32.partialorder %v1677, 0.7853982
      %vm1679 = vcmp.lt.s32.totalorder %v209, 0
      %v1680 = vand.u32 %v209, 2139095040
      %v1681 = vshrl.u32 %v1680, 23
      %v1682 = vsub.s32 %v1681, 127
      %v1683 = vand.u32 2147483647, %v209
      %v1684 = vand.u32 %v1683, 8388607
      %v1685 = vor.u32 %v1684, 8388608
      %v1686 = vsub.s32 0, %v1685
      %v1687 = vadd.s32 %v1682, 1
      %vm1688 = vcmp.gt.s32.totalorder %v1687, 0
      %v1689 = vsel %vm1688, %v1687, 0
      %v1690 = vshrl.u32 %v1689, 5
      %v1691 = vand.u32 %v1689, 31
      %v1692 = vsub.s32 32, %v1691
      %v1693 = vshrl.u32 683565275, %v1692
      %v1694 = vshll.u32 683565275, %v1691
      %v1695 = vshrl.u32 2475754826, %v1692
      %v1696 = vor.u32 %v1694, %v1695
      %v1697 = vshll.u32 2475754826, %v1691
      %v1698 = vshrl.u32 2131351028, %v1692
      %v1699 = vor.u32 %v1697, %v1698
      %v1700 = vshll.u32 2131351028, %v1691
      %v1701 = vshrl.u32 2102212464, %v1692
      %v1702 = vor.u32 %v1700, %v1701
      %v1703 = vshll.u32 2102212464, %v1691
      %v1704 = vshrl.u32 920167782, %v1692
      %v1705 = vor.u32 %v1703, %v1704
      %v1706 = vshll.u32 920167782, %v1691
      %v1707 = vshrl.u32 1326507024, %v1692
      %v1708 = vor.u32 %v1706, %v1707
      %vm1709 = vcmp.lt.s32.totalorder %v1690, 1
      %vm1710 = vcmp.lt.s32.totalorder %v1690, 2
      %vm1711 = vcmp.lt.s32.totalorder %v1690, 3
      %vm1712 = vcmp.lt.s32.totalorder %v1690, 4
      %v1713 = vsel %vm1709, %v1693, %v1696
      %v1714 = vsel %vm1712, %v1702, 2102212464
      %v1715 = vsel %vm1711, %v1699, %v1714
      %v1716 = vsel %vm1710, %v1713, %v1715
      %v1717 = vsel %vm1709, %v1696, %v1699
      %v1718 = vsel %vm1712, %v1705, 920167782
      %v1719 = vsel %vm1711, %v1702, %v1718
      %v1720 = vsel %vm1710, %v1717, %v1719
      %v1721 = vsel %vm1709, %v1699, %v1702
      %v1722 = vsel %vm1712, %v1708, 1326507024
      %v1723 = vsel %vm1711, %v1705, %v1722
      %v1724 = vsel %vm1710, %v1721, %v1723
      %v1725 = vshll.u32 %v1685, 8
      %v1726 = vmul.u32.u64.compose %v1725, %v1724
      %v1727 = vextract.low.u32 %v1726
      %v1728 = vextract.high.u32 %v1726
      %v1729 = vmul.u32.u64.compose %v1725, %v1720
      %v1730 = vextract.low.u32 %v1729
      %v1731 = vextract.high.u32 %v1729
      %v1732 = vmul.u32 %v1725, %v1716
      %v1733 = vadd.s32 %v1728, %v1730
      %vm1734 = vc.u32 %v1728, %v1730
      %v1735 = vadd.s32 %v1731, 1
      %v1736 = vsel %vm1734, %v1735, %v1731
      %v1737 = vadd.s32 %v1732, %v1736
      %v1738 = vadd.s32 %v1737, 536870912
      %v1739 = vshrl.u32 %v1738, 30
      %v1740 = vshll.u32 %v1739, 30
      %v1741 = vsub.s32 %v1737, %v1740
      %vm1742 = vcmp.lt.s32.totalorder %v1741, 0
      %v1743 = vsub.s32 0, %v1741
      %v1744 = vsel %vm1742, %v1743, %v1741
      %v1745 = vclz %v1744
      %v1746 = vsub.s32 %v1745, 2
      %vm1747 = vcmp.gt.s32.totalorder 0, %v1746
      %v1748 = vsel %vm1747, 0, %v1746
      %v1749 = vsub.s32 32, %v1748
      %v1750 = vshll.u32 %v1741, %v1748
      %v1751 = vshrl.u32 %v1733, %v1749
      %v1752 = vor.u32 %v1750, %v1751
      %v1753 = vsub.s32 4294967266, %v1748
      %v1754 = vadd.s32 %v1753, 127
      %v1755 = vshll.u32 %v1754, 23
      %v1756 = vor.u32 4788187, %v1755
      %v1757 = vand.u32 2147483647, %v1756
      %v1759 = vcvt.s32.f32 %v1752
      %v1760 = vmul.f32 %v1759, %v1757
      %v1761 = vxor.u32 %v1760, 2147483648
      %v1762 = vsel %vm1679, %v1761, %v1760
      %v1763 = vsub.s32 4, %v1739
      %v1764 = vsel %vm1679, %v1763, %v1739
      %v1765 = vsel %vm1678, %v209, %v1762
      %v1766 = vsel %vm1678, 0, %v1764
      %v1767 = vcosq.f32.pop %v1765
      %v1768 = vsinq.f32.pop %v1765
      %vm1769 = vweird.f32 %v209
      %v1770 = vand.u32 %v1766, 3
      %vm1771 = vcmp.lt.s32.totalorder %v1770, 2
      %vm1772 = vcmp.eq.s32.totalorder %v1770, 0
      %v1773 = vxor.u32 %v1768, 2147483648
      %v1774 = vsel %vm1772, %v1767, %v1773
      %vm1775 = vcmp.eq.s32.totalorder %v1770, 2
      %v1776 = vxor.u32 %v1767, 2147483648
      %v1777 = vsel %vm1775, %v1776, %v1768
      %v1778 = vsel %vm1771, %v1774, %v1777
      %v1779 = vsel %vm1769, nan, %v1778
      %v1780 = vand.u32 2147483647, %v210
      %vm1781 = vcmp.le.f32.partialorder %v1780, 0.7853982
      %vm1782 = vcmp.lt.s32.totalorder %v210, 0
      %v1783 = vand.u32 %v210, 2139095040
      %v1784 = vshrl.u32 %v1783, 23
      %v1785 = vsub.s32 %v1784, 127
      %v1786 = vand.u32 2147483647, %v210
      %v1787 = vand.u32 %v1786, 8388607
      %v1788 = vor.u32 %v1787, 8388608
      %v1789 = vsub.s32 0, %v1788
      %v1790 = vadd.s32 %v1785, 1
      %vm1791 = vcmp.gt.s32.totalorder %v1790, 0
      %v1792 = vsel %vm1791, %v1790, 0
      %v1793 = vshrl.u32 %v1792, 5
      %v1794 = vand.u32 %v1792, 31
      %v1795 = vsub.s32 32, %v1794
      %v1796 = vshrl.u32 683565275, %v1795
      %v1797 = vshll.u32 683565275, %v1794
      %v1798 = vshrl.u32 2475754826, %v1795
      %v1799 = vor.u32 %v1797, %v1798
      %v1800 = vshll.u32 2475754826, %v1794
      %v1801 = vshrl.u32 2131351028, %v1795
      %v1802 = vor.u32 %v1800, %v1801
      %v1803 = vshll.u32 2131351028, %v1794
      %v1804 = vshrl.u32 2102212464, %v1795
      %v1805 = vor.u32 %v1803, %v1804
      %v1806 = vshll.u32 2102212464, %v1794
      %v1807 = vshrl.u32 920167782, %v1795
      %v1808 = vor.u32 %v1806, %v1807
      %v1809 = vshll.u32 920167782, %v1794
      %v1810 = vshrl.u32 1326507024, %v1795
      %v1811 = vor.u32 %v1809, %v1810
      %vm1812 = vcmp.lt.s32.totalorder %v1793, 1
      %vm1813 = vcmp.lt.s32.totalorder %v1793, 2
      %vm1814 = vcmp.lt.s32.totalorder %v1793, 3
      %vm1815 = vcmp.lt.s32.totalorder %v1793, 4
      %v1816 = vsel %vm1812, %v1796, %v1799
      %v1817 = vsel %vm1815, %v1805, 2102212464
      %v1818 = vsel %vm1814, %v1802, %v1817
      %v1819 = vsel %vm1813, %v1816, %v1818
      %v1820 = vsel %vm1812, %v1799, %v1802
      %v1821 = vsel %vm1815, %v1808, 920167782
      %v1822 = vsel %vm1814, %v1805, %v1821
      %v1823 = vsel %vm1813, %v1820, %v1822
      %v1824 = vsel %vm1812, %v1802, %v1805
      %v1825 = vsel %vm1815, %v1811, 1326507024
      %v1826 = vsel %vm1814, %v1808, %v1825
      %v1827 = vsel %vm1813, %v1824, %v1826
      %v1828 = vshll.u32 %v1788, 8
      %v1829 = vmul.u32.u64.compose %v1828, %v1827
      %v1830 = vextract.low.u32 %v1829
      %v1831 = vextract.high.u32 %v1829
      %v1832 = vmul.u32.u64.compose %v1828, %v1823
      %v1833 = vextract.low.u32 %v1832
      %v1834 = vextract.high.u32 %v1832
      %v1835 = vmul.u32 %v1828, %v1819
      %v1836 = vadd.s32 %v1831, %v1833
      %vm1837 = vc.u32 %v1831, %v1833
      %v1838 = vadd.s32 %v1834, 1
      %v1839 = vsel %vm1837, %v1838, %v1834
      %v1840 = vadd.s32 %v1835, %v1839
      %v1841 = vadd.s32 %v1840, 536870912
      %v1842 = vshrl.u32 %v1841, 30
      %v1843 = vshll.u32 %v1842, 30
      %v1844 = vsub.s32 %v1840, %v1843
      %vm1845 = vcmp.lt.s32.totalorder %v1844, 0
      %v1846 = vsub.s32 0, %v1844
      %v1847 = vsel %vm1845, %v1846, %v1844
      %v1848 = vclz %v1847
      %v1849 = vsub.s32 %v1848, 2
      %vm1850 = vcmp.gt.s32.totalorder 0, %v1849
      %v1851 = vsel %vm1850, 0, %v1849
      %v1852 = vsub.s32 32, %v1851
      %v1853 = vshll.u32 %v1844, %v1851
      %v1854 = vshrl.u32 %v1836, %v1852
      %v1855 = vor.u32 %v1853, %v1854
      %v1856 = vsub.s32 4294967266, %v1851
      %v1857 = vadd.s32 %v1856, 127
      %v1858 = vshll.u32 %v1857, 23
      %v1859 = vor.u32 4788187, %v1858
      %v1860 = vand.u32 2147483647, %v1859
      %v1862 = vcvt.s32.f32 %v1855
      %v1863 = vmul.f32 %v1862, %v1860
      %v1864 = vxor.u32 %v1863, 2147483648
      %v1865 = vsel %vm1782, %v1864, %v1863
      %v1866 = vsub.s32 4, %v1842
      %v1867 = vsel %vm1782, %v1866, %v1842
      %v1868 = vsel %vm1781, %v210, %v1865
      %v1869 = vsel %vm1781, 0, %v1867
      %v1870 = vcosq.f32.pop %v1868
      %v1871 = vsinq.f32.pop %v1868
      %vm1872 = vweird.f32 %v210
      %v1873 = vand.u32 %v1869, 3
      %vm1874 = vcmp.lt.s32.totalorder %v1873, 2
      %vm1875 = vcmp.eq.s32.totalorder %v1873, 0
      %v1876 = vxor.u32 %v1871, 2147483648
      %v1877 = vsel %vm1875, %v1870, %v1876
      %vm1878 = vcmp.eq.s32.totalorder %v1873, 2
      %v1879 = vxor.u32 %v1870, 2147483648
      %v1880 = vsel %vm1878, %v1879, %v1871
      %v1881 = vsel %vm1874, %v1877, %v1880
      %v1882 = vsel %vm1872, nan, %v1881
      %v1883 = vand.u32 2147483647, %v211
      %vm1884 = vcmp.le.f32.partialorder %v1883, 0.7853982
      %vm1885 = vcmp.lt.s32.totalorder %v211, 0
      %v1886 = vand.u32 %v211, 2139095040
      %v1887 = vshrl.u32 %v1886, 23
      %v1888 = vsub.s32 %v1887, 127
      %v1889 = vand.u32 2147483647, %v211
      %v1890 = vand.u32 %v1889, 8388607
      %v1891 = vor.u32 %v1890, 8388608
      %v1892 = vsub.s32 0, %v1891
      %v1893 = vadd.s32 %v1888, 1
      %vm1894 = vcmp.gt.s32.totalorder %v1893, 0
      %v1895 = vsel %vm1894, %v1893, 0
      %v1896 = vshrl.u32 %v1895, 5
      %v1897 = vand.u32 %v1895, 31
      %v1898 = vsub.s32 32, %v1897
      %v1899 = vshrl.u32 683565275, %v1898
      %v1900 = vshll.u32 683565275, %v1897
      %v1901 = vshrl.u32 2475754826, %v1898
      %v1902 = vor.u32 %v1900, %v1901
      %v1903 = vshll.u32 2475754826, %v1897
      %v1904 = vshrl.u32 2131351028, %v1898
      %v1905 = vor.u32 %v1903, %v1904
      %v1906 = vshll.u32 2131351028, %v1897
      %v1907 = vshrl.u32 2102212464, %v1898
      %v1908 = vor.u32 %v1906, %v1907
      %v1909 = vshll.u32 2102212464, %v1897
      %v1910 = vshrl.u32 920167782, %v1898
      %v1911 = vor.u32 %v1909, %v1910
      %v1912 = vshll.u32 920167782, %v1897
      %v1913 = vshrl.u32 1326507024, %v1898
      %v1914 = vor.u32 %v1912, %v1913
      %vm1915 = vcmp.lt.s32.totalorder %v1896, 1
      %vm1916 = vcmp.lt.s32.totalorder %v1896, 2
      %vm1917 = vcmp.lt.s32.totalorder %v1896, 3
      %vm1918 = vcmp.lt.s32.totalorder %v1896, 4
      %v1919 = vsel %vm1915, %v1899, %v1902
      %v1920 = vsel %vm1918, %v1908, 2102212464
      %v1921 = vsel %vm1917, %v1905, %v1920
      %v1922 = vsel %vm1916, %v1919, %v1921
      %v1923 = vsel %vm1915, %v1902, %v1905
      %v1924 = vsel %vm1918, %v1911, 920167782
      %v1925 = vsel %vm1917, %v1908, %v1924
      %v1926 = vsel %vm1916, %v1923, %v1925
      %v1927 = vsel %vm1915, %v1905, %v1908
      %v1928 = vsel %vm1918, %v1914, 1326507024
      %v1929 = vsel %vm1917, %v1911, %v1928
      %v1930 = vsel %vm1916, %v1927, %v1929
      %v1931 = vshll.u32 %v1891, 8
      %v1932 = vmul.u32.u64.compose %v1931, %v1930
      %v1933 = vextract.low.u32 %v1932
      %v1934 = vextract.high.u32 %v1932
      %v1935 = vmul.u32.u64.compose %v1931, %v1926
      %v1936 = vextract.low.u32 %v1935
      %v1937 = vextract.high.u32 %v1935
      %v1938 = vmul.u32 %v1931, %v1922
      %v1939 = vadd.s32 %v1934, %v1936
      %vm1940 = vc.u32 %v1934, %v1936
      %v1941 = vadd.s32 %v1937, 1
      %v1942 = vsel %vm1940, %v1941, %v1937
      %v1943 = vadd.s32 %v1938, %v1942
      %v1944 = vadd.s32 %v1943, 536870912
      %v1945 = vshrl.u32 %v1944, 30
      %v1946 = vshll.u32 %v1945, 30
      %v1947 = vsub.s32 %v1943, %v1946
      %vm1948 = vcmp.lt.s32.totalorder %v1947, 0
      %v1949 = vsub.s32 0, %v1947
      %v1950 = vsel %vm1948, %v1949, %v1947
      %v1951 = vclz %v1950
      %v1952 = vsub.s32 %v1951, 2
      %vm1953 = vcmp.gt.s32.totalorder 0, %v1952
      %v1954 = vsel %vm1953, 0, %v1952
      %v1955 = vsub.s32 32, %v1954
      %v1956 = vshll.u32 %v1947, %v1954
      %v1957 = vshrl.u32 %v1939, %v1955
      %v1958 = vor.u32 %v1956, %v1957
      %v1959 = vsub.s32 4294967266, %v1954
      %v1960 = vadd.s32 %v1959, 127
      %v1961 = vshll.u32 %v1960, 23
      %v1962 = vor.u32 4788187, %v1961
      %v1963 = vand.u32 2147483647, %v1962
      %v1965 = vcvt.s32.f32 %v1958
      %v1966 = vmul.f32 %v1965, %v1963
      %v1967 = vxor.u32 %v1966, 2147483648
      %v1968 = vsel %vm1885, %v1967, %v1966
      %v1969 = vsub.s32 4, %v1945
      %v1970 = vsel %vm1885, %v1969, %v1945
      %v1971 = vsel %vm1884, %v211, %v1968
      %v1972 = vsel %vm1884, 0, %v1970
      %v1973 = vcosq.f32.pop %v1971
      %v1974 = vsinq.f32.pop %v1971
      %vm1975 = vweird.f32 %v211
      %v1976 = vand.u32 %v1972, 3
      %vm1977 = vcmp.lt.s32.totalorder %v1976, 2
      %vm1978 = vcmp.eq.s32.totalorder %v1976, 0
      %v1979 = vxor.u32 %v1974, 2147483648
      %v1980 = vsel %vm1978, %v1973, %v1979
      %vm1981 = vcmp.eq.s32.totalorder %v1976, 2
      %v1982 = vxor.u32 %v1973, 2147483648
      %v1983 = vsel %vm1981, %v1982, %v1974
      %v1984 = vsel %vm1977, %v1980, %v1983
      %v1985 = vsel %vm1975, nan, %v1984
      %v1986 = vand.u32 2147483647, %v212
      %vm1987 = vcmp.le.f32.partialorder %v1986, 0.7853982
      %vm1988 = vcmp.lt.s32.totalorder %v212, 0
      %v1989 = vand.u32 %v212, 2139095040
      %v1990 = vshrl.u32 %v1989, 23
      %v1991 = vsub.s32 %v1990, 127
      %v1992 = vand.u32 2147483647, %v212
      %v1993 = vand.u32 %v1992, 8388607
      %v1994 = vor.u32 %v1993, 8388608
      %v1995 = vsub.s32 0, %v1994
      %v1996 = vadd.s32 %v1991, 1
      %vm1997 = vcmp.gt.s32.totalorder %v1996, 0
      %v1998 = vsel %vm1997, %v1996, 0
      %v1999 = vshrl.u32 %v1998, 5
      %v2000 = vand.u32 %v1998, 31
      %v2001 = vsub.s32 32, %v2000
      %v2002 = vshrl.u32 683565275, %v2001
      %v2003 = vshll.u32 683565275, %v2000
      %v2004 = vshrl.u32 2475754826, %v2001
      %v2005 = vor.u32 %v2003, %v2004
      %v2006 = vshll.u32 2475754826, %v2000
      %v2007 = vshrl.u32 2131351028, %v2001
      %v2008 = vor.u32 %v2006, %v2007
      %v2009 = vshll.u32 2131351028, %v2000
      %v2010 = vshrl.u32 2102212464, %v2001
      %v2011 = vor.u32 %v2009, %v2010
      %v2012 = vshll.u32 2102212464, %v2000
      %v2013 = vshrl.u32 920167782, %v2001
      %v2014 = vor.u32 %v2012, %v2013
      %v2015 = vshll.u32 920167782, %v2000
      %v2016 = vshrl.u32 1326507024, %v2001
      %v2017 = vor.u32 %v2015, %v2016
      %vm2018 = vcmp.lt.s32.totalorder %v1999, 1
      %vm2019 = vcmp.lt.s32.totalorder %v1999, 2
      %vm2020 = vcmp.lt.s32.totalorder %v1999, 3
      %vm2021 = vcmp.lt.s32.totalorder %v1999, 4
      %v2022 = vsel %vm2018, %v2002, %v2005
      %v2023 = vsel %vm2021, %v2011, 2102212464
      %v2024 = vsel %vm2020, %v2008, %v2023
      %v2025 = vsel %vm2019, %v2022, %v2024
      %v2026 = vsel %vm2018, %v2005, %v2008
      %v2027 = vsel %vm2021, %v2014, 920167782
      %v2028 = vsel %vm2020, %v2011, %v2027
      %v2029 = vsel %vm2019, %v2026, %v2028
      %v2030 = vsel %vm2018, %v2008, %v2011
      %v2031 = vsel %vm2021, %v2017, 1326507024
      %v2032 = vsel %vm2020, %v2014, %v2031
      %v2033 = vsel %vm2019, %v2030, %v2032
      %v2034 = vshll.u32 %v1994, 8
      %v2035 = vmul.u32.u64.compose %v2034, %v2033
      %v2036 = vextract.low.u32 %v2035
      %v2037 = vextract.high.u32 %v2035
      %v2038 = vmul.u32.u64.compose %v2034, %v2029
      %v2039 = vextract.low.u32 %v2038
      %v2040 = vextract.high.u32 %v2038
      %v2041 = vmul.u32 %v2034, %v2025
      %v2042 = vadd.s32 %v2037, %v2039
      %vm2043 = vc.u32 %v2037, %v2039
      %v2044 = vadd.s32 %v2040, 1
      %v2045 = vsel %vm2043, %v2044, %v2040
      %v2046 = vadd.s32 %v2041, %v2045
      %v2047 = vadd.s32 %v2046, 536870912
      %v2048 = vshrl.u32 %v2047, 30
      %v2049 = vshll.u32 %v2048, 30
      %v2050 = vsub.s32 %v2046, %v2049
      %vm2051 = vcmp.lt.s32.totalorder %v2050, 0
      %v2052 = vsub.s32 0, %v2050
      %v2053 = vsel %vm2051, %v2052, %v2050
      %v2054 = vclz %v2053
      %v2055 = vsub.s32 %v2054, 2
      %vm2056 = vcmp.gt.s32.totalorder 0, %v2055
      %v2057 = vsel %vm2056, 0, %v2055
      %v2058 = vsub.s32 32, %v2057
      %v2059 = vshll.u32 %v2050, %v2057
      %v2060 = vshrl.u32 %v2042, %v2058
      %v2061 = vor.u32 %v2059, %v2060
      %v2062 = vsub.s32 4294967266, %v2057
      %v2063 = vadd.s32 %v2062, 127
      %v2064 = vshll.u32 %v2063, 23
      %v2065 = vor.u32 4788187, %v2064
      %v2066 = vand.u32 2147483647, %v2065
      %v2068 = vcvt.s32.f32 %v2061
      %v2069 = vmul.f32 %v2068, %v2066
      %v2070 = vxor.u32 %v2069, 2147483648
      %v2071 = vsel %vm1988, %v2070, %v2069
      %v2072 = vsub.s32 4, %v2048
      %v2073 = vsel %vm1988, %v2072, %v2048
      %v2074 = vsel %vm1987, %v212, %v2071
      %v2075 = vsel %vm1987, 0, %v2073
      %v2076 = vcosq.f32.pop %v2074
      %v2077 = vsinq.f32.pop %v2074
      %vm2078 = vweird.f32 %v212
      %v2079 = vand.u32 %v2075, 3
      %vm2080 = vcmp.lt.s32.totalorder %v2079, 2
      %vm2081 = vcmp.eq.s32.totalorder %v2079, 0
      %v2082 = vxor.u32 %v2077, 2147483648
      %v2083 = vsel %vm2081, %v2076, %v2082
      %vm2084 = vcmp.eq.s32.totalorder %v2079, 2
      %v2085 = vxor.u32 %v2076, 2147483648
      %v2086 = vsel %vm2084, %v2085, %v2077
      %v2087 = vsel %vm2080, %v2083, %v2086
      %v2088 = vsel %vm2078, nan, %v2087
      %v2089 = vand.u32 2147483647, %v213
      %vm2090 = vcmp.le.f32.partialorder %v2089, 0.7853982
      %vm2091 = vcmp.lt.s32.totalorder %v213, 0
      %v2092 = vand.u32 %v213, 2139095040
      %v2093 = vshrl.u32 %v2092, 23
      %v2094 = vsub.s32 %v2093, 127
      %v2095 = vand.u32 2147483647, %v213
      %v2096 = vand.u32 %v2095, 8388607
      %v2097 = vor.u32 %v2096, 8388608
      %v2098 = vsub.s32 0, %v2097
      %v2099 = vadd.s32 %v2094, 1
      %vm2100 = vcmp.gt.s32.totalorder %v2099, 0
      %v2101 = vsel %vm2100, %v2099, 0
      %v2102 = vshrl.u32 %v2101, 5
      %v2103 = vand.u32 %v2101, 31
      %v2104 = vsub.s32 32, %v2103
      %v2105 = vshrl.u32 683565275, %v2104
      %v2106 = vshll.u32 683565275, %v2103
      %v2107 = vshrl.u32 2475754826, %v2104
      %v2108 = vor.u32 %v2106, %v2107
      %v2109 = vshll.u32 2475754826, %v2103
      %v2110 = vshrl.u32 2131351028, %v2104
      %v2111 = vor.u32 %v2109, %v2110
      %v2112 = vshll.u32 2131351028, %v2103
      %v2113 = vshrl.u32 2102212464, %v2104
      %v2114 = vor.u32 %v2112, %v2113
      %v2115 = vshll.u32 2102212464, %v2103
      %v2116 = vshrl.u32 920167782, %v2104
      %v2117 = vor.u32 %v2115, %v2116
      %v2118 = vshll.u32 920167782, %v2103
      %v2119 = vshrl.u32 1326507024, %v2104
      %v2120 = vor.u32 %v2118, %v2119
      %vm2121 = vcmp.lt.s32.totalorder %v2102, 1
      %vm2122 = vcmp.lt.s32.totalorder %v2102, 2
      %vm2123 = vcmp.lt.s32.totalorder %v2102, 3
      %vm2124 = vcmp.lt.s32.totalorder %v2102, 4
      %v2125 = vsel %vm2121, %v2105, %v2108
      %v2126 = vsel %vm2124, %v2114, 2102212464
      %v2127 = vsel %vm2123, %v2111, %v2126
      %v2128 = vsel %vm2122, %v2125, %v2127
      %v2129 = vsel %vm2121, %v2108, %v2111
      %v2130 = vsel %vm2124, %v2117, 920167782
      %v2131 = vsel %vm2123, %v2114, %v2130
      %v2132 = vsel %vm2122, %v2129, %v2131
      %v2133 = vsel %vm2121, %v2111, %v2114
      %v2134 = vsel %vm2124, %v2120, 1326507024
      %v2135 = vsel %vm2123, %v2117, %v2134
      %v2136 = vsel %vm2122, %v2133, %v2135
      %v2137 = vshll.u32 %v2097, 8
      %v2138 = vmul.u32.u64.compose %v2137, %v2136
      %v2139 = vextract.low.u32 %v2138
      %v2140 = vextract.high.u32 %v2138
      %v2141 = vmul.u32.u64.compose %v2137, %v2132
      %v2142 = vextract.low.u32 %v2141
      %v2143 = vextract.high.u32 %v2141
      %v2144 = vmul.u32 %v2137, %v2128
      %v2145 = vadd.s32 %v2140, %v2142
      %vm2146 = vc.u32 %v2140, %v2142
      %v2147 = vadd.s32 %v2143, 1
      %v2148 = vsel %vm2146, %v2147, %v2143
      %v2149 = vadd.s32 %v2144, %v2148
      %v2150 = vadd.s32 %v2149, 536870912
      %v2151 = vshrl.u32 %v2150, 30
      %v2152 = vshll.u32 %v2151, 30
      %v2153 = vsub.s32 %v2149, %v2152
      %vm2154 = vcmp.lt.s32.totalorder %v2153, 0
      %v2155 = vsub.s32 0, %v2153
      %v2156 = vsel %vm2154, %v2155, %v2153
      %v2157 = vclz %v2156
      %v2158 = vsub.s32 %v2157, 2
      %vm2159 = vcmp.gt.s32.totalorder 0, %v2158
      %v2160 = vsel %vm2159, 0, %v2158
      %v2161 = vsub.s32 32, %v2160
      %v2162 = vshll.u32 %v2153, %v2160
      %v2163 = vshrl.u32 %v2145, %v2161
      %v2164 = vor.u32 %v2162, %v2163
      %v2165 = vsub.s32 4294967266, %v2160
      %v2166 = vadd.s32 %v2165, 127
      %v2167 = vshll.u32 %v2166, 23
      %v2168 = vor.u32 4788187, %v2167
      %v2169 = vand.u32 2147483647, %v2168
      %v2171 = vcvt.s32.f32 %v2164
      %v2172 = vmul.f32 %v2171, %v2169
      %v2173 = vxor.u32 %v2172, 2147483648
      %v2174 = vsel %vm2091, %v2173, %v2172
      %v2175 = vsub.s32 4, %v2151
      %v2176 = vsel %vm2091, %v2175, %v2151
      %v2177 = vsel %vm2090, %v213, %v2174
      %v2178 = vsel %vm2090, 0, %v2176
      %v2179 = vcosq.f32.pop %v2177
      %v2180 = vsinq.f32.pop %v2177
      %vm2181 = vweird.f32 %v213
      %v2182 = vand.u32 %v2178, 3
      %vm2183 = vcmp.lt.s32.totalorder %v2182, 2
      %vm2184 = vcmp.eq.s32.totalorder %v2182, 0
      %v2185 = vxor.u32 %v2180, 2147483648
      %v2186 = vsel %vm2184, %v2179, %v2185
      %vm2187 = vcmp.eq.s32.totalorder %v2182, 2
      %v2188 = vxor.u32 %v2179, 2147483648
      %v2189 = vsel %vm2187, %v2188, %v2180
      %v2190 = vsel %vm2183, %v2186, %v2189
      %v2191 = vsel %vm2181, nan, %v2190
      %v2192 = vand.u32 2147483647, %v214
      %vm2193 = vcmp.le.f32.partialorder %v2192, 0.7853982
      %vm2194 = vcmp.lt.s32.totalorder %v214, 0
      %v2195 = vand.u32 %v214, 2139095040
      %v2196 = vshrl.u32 %v2195, 23
      %v2197 = vsub.s32 %v2196, 127
      %v2198 = vand.u32 2147483647, %v214
      %v2199 = vand.u32 %v2198, 8388607
      %v2200 = vor.u32 %v2199, 8388608
      %v2201 = vsub.s32 0, %v2200
      %v2202 = vadd.s32 %v2197, 1
      %vm2203 = vcmp.gt.s32.totalorder %v2202, 0
      %v2204 = vsel %vm2203, %v2202, 0
      %v2205 = vshrl.u32 %v2204, 5
      %v2206 = vand.u32 %v2204, 31
      %v2207 = vsub.s32 32, %v2206
      %v2208 = vshrl.u32 683565275, %v2207
      %v2209 = vshll.u32 683565275, %v2206
      %v2210 = vshrl.u32 2475754826, %v2207
      %v2211 = vor.u32 %v2209, %v2210
      %v2212 = vshll.u32 2475754826, %v2206
      %v2213 = vshrl.u32 2131351028, %v2207
      %v2214 = vor.u32 %v2212, %v2213
      %v2215 = vshll.u32 2131351028, %v2206
      %v2216 = vshrl.u32 2102212464, %v2207
      %v2217 = vor.u32 %v2215, %v2216
      %v2218 = vshll.u32 2102212464, %v2206
      %v2219 = vshrl.u32 920167782, %v2207
      %v2220 = vor.u32 %v2218, %v2219
      %v2221 = vshll.u32 920167782, %v2206
      %v2222 = vshrl.u32 1326507024, %v2207
      %v2223 = vor.u32 %v2221, %v2222
      %vm2224 = vcmp.lt.s32.totalorder %v2205, 1
      %vm2225 = vcmp.lt.s32.totalorder %v2205, 2
      %vm2226 = vcmp.lt.s32.totalorder %v2205, 3
      %vm2227 = vcmp.lt.s32.totalorder %v2205, 4
      %v2228 = vsel %vm2224, %v2208, %v2211
      %v2229 = vsel %vm2227, %v2217, 2102212464
      %v2230 = vsel %vm2226, %v2214, %v2229
      %v2231 = vsel %vm2225, %v2228, %v2230
      %v2232 = vsel %vm2224, %v2211, %v2214
      %v2233 = vsel %vm2227, %v2220, 920167782
      %v2234 = vsel %vm2226, %v2217, %v2233
      %v2235 = vsel %vm2225, %v2232, %v2234
      %v2236 = vsel %vm2224, %v2214, %v2217
      %v2237 = vsel %vm2227, %v2223, 1326507024
      %v2238 = vsel %vm2226, %v2220, %v2237
      %v2239 = vsel %vm2225, %v2236, %v2238
      %v2240 = vshll.u32 %v2200, 8
      %v2241 = vmul.u32.u64.compose %v2240, %v2239
      %v2242 = vextract.low.u32 %v2241
      %v2243 = vextract.high.u32 %v2241
      %v2244 = vmul.u32.u64.compose %v2240, %v2235
      %v2245 = vextract.low.u32 %v2244
      %v2246 = vextract.high.u32 %v2244
      %v2247 = vmul.u32 %v2240, %v2231
      %v2248 = vadd.s32 %v2243, %v2245
      %vm2249 = vc.u32 %v2243, %v2245
      %v2250 = vadd.s32 %v2246, 1
      %v2251 = vsel %vm2249, %v2250, %v2246
      %v2252 = vadd.s32 %v2247, %v2251
      %v2253 = vadd.s32 %v2252, 536870912
      %v2254 = vshrl.u32 %v2253, 30
      %v2255 = vshll.u32 %v2254, 30
      %v2256 = vsub.s32 %v2252, %v2255
      %vm2257 = vcmp.lt.s32.totalorder %v2256, 0
      %v2258 = vsub.s32 0, %v2256
      %v2259 = vsel %vm2257, %v2258, %v2256
      %v2260 = vclz %v2259
      %v2261 = vsub.s32 %v2260, 2
      %vm2262 = vcmp.gt.s32.totalorder 0, %v2261
      %v2263 = vsel %vm2262, 0, %v2261
      %v2264 = vsub.s32 32, %v2263
      %v2265 = vshll.u32 %v2256, %v2263
      %v2266 = vshrl.u32 %v2248, %v2264
      %v2267 = vor.u32 %v2265, %v2266
      %v2268 = vsub.s32 4294967266, %v2263
      %v2269 = vadd.s32 %v2268, 127
      %v2270 = vshll.u32 %v2269, 23
      %v2271 = vor.u32 4788187, %v2270
      %v2272 = vand.u32 2147483647, %v2271
      %v2274 = vcvt.s32.f32 %v2267
      %v2275 = vmul.f32 %v2274, %v2272
      %v2276 = vxor.u32 %v2275, 2147483648
      %v2277 = vsel %vm2194, %v2276, %v2275
      %v2278 = vsub.s32 4, %v2254
      %v2279 = vsel %vm2194, %v2278, %v2254
      %v2280 = vsel %vm2193, %v214, %v2277
      %v2281 = vsel %vm2193, 0, %v2279
      %v2282 = vcosq.f32.pop %v2280
      %v2283 = vsinq.f32.pop %v2280
      %vm2284 = vweird.f32 %v214
      %v2285 = vand.u32 %v2281, 3
      %vm2286 = vcmp.lt.s32.totalorder %v2285, 2
      %vm2287 = vcmp.eq.s32.totalorder %v2285, 0
      %v2288 = vxor.u32 %v2283, 2147483648
      %v2289 = vsel %vm2287, %v2282, %v2288
      %vm2290 = vcmp.eq.s32.totalorder %v2285, 2
      %v2291 = vxor.u32 %v2282, 2147483648
      %v2292 = vsel %vm2290, %v2291, %v2283
      %v2293 = vsel %vm2286, %v2289, %v2292
      %v2294 = vsel %vm2284, nan, %v2293
      %2295 = vst [vmem:[%s203 + $0x50] sm:$0xff] %v1367
      %2296 = vst [vmem:[%s203 + $0x58] sm:$0xff] %v1470
      %2297 = vst [vmem:[%s203 + $0x60] sm:$0xff] %v1573
      %2298 = vst [vmem:[%s203 + $0x68] sm:$0xff] %v1676
      %2299 = vst [vmem:[%s203 + $0x70] sm:$0xff] %v1779
      %2300 = vst [vmem:[%s203 + $0x78] sm:$0xff] %v1882
      %2301 = vst [vmem:[%s203 + $0x80] sm:$0xff] %v1985
      %2302 = vst [vmem:[%s203 + $0x88] sm:$0xff] %v2088
      %2303 = vst [vmem:[%s203 + $0x90] sm:$0xff] %v2191
      %2304 = vst [vmem:[%s203 + $0x98] sm:$0xff] %v2294
      %v2305 = vld [vmem:[%s193] sm:$0x77]
      %v2307 = vcombine.high %v2305, %v2305
      %2309 = vst [vmem:[%s203 + $0xa0] sm:$0x7] %v2305
      %2310 = vst [vmem:[%s203 + $0xa8] sm:$0x7] %v2307
      %s2311 = smul.u32 2, %s17
      %p2312 = scmp.lt.s32.totalorder %s18, 1
      %s2313 = scalar_select %p2312, %s18, 1
      %p2314 = scmp.lt.s32.totalorder %s2311, 1
      %s2315 = scalar_select %p2314, %s2311, 1
      %s2316 = smul.addr %s2313, 22
      %s2317 = sadd.s32 %s2315, %s2316
      %s2318 = smul.addr %s2317, 8
      %s2319 = scalar_lea.vmem %s2, %s2318
      // Predicated region
      $region29: #{simple_implicit_featurizer.1} parent=27 // pred_check
        %p2320 = pneg %p99
      $region30: #{simple_implicit_featurizer.1} parent=27 // pred_check_branch
        %2322 = sbr.rel (%p2320) target = $region32
      $region31: #{simple_implicit_featurizer.1} parent=27 // pred_region
        %s2323 = smul.u32 2, %s17
      $region32: #{simple_implicit_featurizer.1} parent=27 // pred_fallthru
        _
    $region28: #{simple_implicit_featurizer.1} parent=5 // pred_fallthru
      _
    %p2324 = scmp.le.s32.totalorder 2, %s8
    // Predicated region
    $region33: #{simple_implicit_featurizer.1} parent=5 // pred_check
      %p2325 = pneg %p2324
    $region34: #{simple_implicit_featurizer.1} parent=5 // pred_check_branch
      %2327 = sbr.rel (%p2325) target = $region36
    $region35: #{simple_implicit_featurizer.1} parent=5 // pred_region
      %s2328 = ssub.s32 %s8, 2
      // Predicated region
      $region37: #{simple_implicit_featurizer.1} parent=35 // pred_check
        %p2329 = pneg %p105
      $region38: #{simple_implicit_featurizer.1} parent=35 // pred_check_branch
        %2331 = sbr.rel (%p2329) target = $region40
      $region39: #{simple_implicit_featurizer.1} parent=35 // pred_region
        %s2332 = smul.u32 2, %s19
        %p2333 = scmp.lt.s32.totalorder %s20, 1
        %s2334 = scalar_select %p2333, %s20, 1
        %p2335 = scmp.lt.s32.totalorder %s2332, 1
        %s2336 = scalar_select %p2335, %s2332, 1
        %s2337 = smul.addr %s2334, 22
        %s2338 = sadd.s32 %s2336, %s2337
        %s2339 = smul.addr %s2338, 8
        %s2340 = scalar_lea.vmem %s2, %s2339
      $region40: #{simple_implicit_featurizer.1} parent=35 // pred_fallthru
        _
    $region36: #{simple_implicit_featurizer.1} parent=5 // pred_fallthru
      _
  $region6: #{simple_implicit_featurizer.1} parent=0 // loop_footer
    %s12 = sadd.s32 1, %s8
  $region7: #{simple_implicit_featurizer.1} parent=0 // loop_footer_branch
    %7 = sbr.rel target = $region3
  $region8: #{simple_implicit_featurizer.1} parent=0 // loop_exit
    _

</llo_original>
